<compile_context>
chip_gen: v7x
topology: tpu7x:2x2x1
jax: 0.10.0
libtpu: 0.0.40
codegen_flags: <defaults>
</compile_context>

<pallas_src>
import functools

import jax
import jax.numpy as jnp
from jax import lax
from jax.experimental import pallas as pl
from jax.experimental.pallas import tpu as pltpu

EPS = 1e-5


def _compute_groups(channels, groups=8):
    # mirrors the group-selection logic in ResBlock.__init__
    g = min(groups, channels) if channels >= groups else 1
    while channels % g != 0 and g > 1:
        g //= 2
    return g


# --------------------- wrapper-side parameter / layout prep ---------------------

def _gn_factored_mix(C, groups, H, W):
    """kron-factored GroupNorm mixer.

    Returns SG (W*C, C) and ST (C, W*C) such that, for per-(x,c) column sums s (.., W*C),
    (s @ SG) @ ST is the per-group mean replicated into every (x', c') lane slot.
    Storage / FLOPs O(W*C*C) instead of O((W*C)^2).
    """
    cpg = C // groups
    gid = jnp.arange(C) // cpg
    G = (gid[:, None] == gid[None, :]).astype(jnp.float32) / float(H * W * cpg)  # (C, C)
    S = jnp.tile(jnp.eye(C, dtype=jnp.float32), (W, 1))                          # (W*C, C)
    return S @ G, S.T


def _banded_conv_weight(w_hwio, W):
    """3x3 'SAME' conv as 3 banded matmuls on (M, W*Cin) row slabs.

    Returns (3, W*Cin, W*Cout); band k multiplies the slab shifted by (k-1) rows in y.
    x zero-padding is encoded in the band structure.
    """
    KH, KW, Cin, Cout = w_hwio.shape
    xi = jnp.arange(W)
    dx = xi[:, None] - xi[None, :]                      # x_in - x_out, (W, W)
    valid = jnp.abs(dx) <= 1
    kx = jnp.clip(dx + 1, 0, 2)                          # kernel x-tap index
    wk = w_hwio[:, kx, :, :]                             # (3, W_in, W_out, Cin, Cout)
    wk = jnp.where(valid[None, :, :, None, None], wk, 0.0)
    return jnp.transpose(wk, (0, 1, 3, 2, 4)).reshape(3, W * Cin, W * Cout)


def _banded_pointwise_weight(w_io, W):
    """1x1 conv as a block-diagonal (W*Cin, W*Cout) matrix."""
    return jnp.kron(jnp.eye(W, dtype=w_io.dtype), w_io)


def _tile_lanes(v, W):
    """(1, C) per-channel vector -> (1, W*C) row matching the (M, W*C) slab layout."""
    return jnp.tile(v.reshape(1, -1), (1, W))


# --------------------------------- kernel body ----------------------------------

def _group_norm_silu(a, ones_blk, expand, sg_ref, st_ref, gamma_ref, beta_ref):
    # a: (M, L) f32, M = B_blk*H rows; statistics are computed per batch element via the
    # block-indicator matmuls (K = M, well-fed) and the kron-factored group mixer.
    col = jnp.dot(ones_blk, a, preferred_element_type=jnp.float32)              # (Bb, L) row sums
    mu = jnp.dot(jnp.dot(col, sg_ref[...], preferred_element_type=jnp.float32),
                 st_ref[...], preferred_element_type=jnp.float32)               # (Bb, L) group mean
    d = a - jnp.dot(expand, mu, preferred_element_type=jnp.float32)             # (M, L)
    colsq = jnp.dot(ones_blk, d * d, preferred_element_type=jnp.float32)        # two-pass variance
    var = jnp.dot(jnp.dot(colsq, sg_ref[...], preferred_element_type=jnp.float32),
                  st_ref[...], preferred_element_type=jnp.float32)              # (Bb, L) group var
    scale = lax.rsqrt(var + EPS) * gamma_ref[...]                               # fold gamma pre-expand
    h = d * jnp.dot(expand, scale, preferred_element_type=jnp.float32) + beta_ref[...]
    return 0.5 * h * (1.0 + jnp.tanh(0.5 * h))                                  # SiLU, single EUP tanh


def _conv3x3_slab(a, w_ref, bias_ref, not_first, not_last):
    # a: (M, L_in). Three accumulated MXU matmuls (one per ky tap). Per-element y
    # zero-padding via {0,1} row masks -> no misaligned lane concat, batching-safe.
    L = a.shape[1]
    zrow = jnp.zeros((1, L), jnp.float32)
    a_prev = not_first * jnp.concatenate([zrow, a[:-1, :]], axis=0)   # row m holds a[m-1]
    a_next = not_last * jnp.concatenate([a[1:, :], zrow], axis=0)     # row m holds a[m+1]
    mm = w_ref.dtype                                                  # bf16 (or f32) MXU operands
    acc = jnp.dot(a_prev.astype(mm), w_ref[0], preferred_element_type=jnp.float32)
    acc = acc + jnp.dot(a.astype(mm), w_ref[1], preferred_element_type=jnp.float32)
    acc = acc + jnp.dot(a_next.astype(mm), w_ref[2], preferred_element_type=jnp.float32)
    return acc + bias_ref[...]


def _resblock_kernel(has_shortcut, *refs):
    if has_shortcut:
        (x_ref, ones_ref, exp_ref, nf_ref, nl_ref,
         g1_ref, bt1_ref, sg1_ref, st1_ref, w1_ref, b1_ref,
         g2_ref, bt2_ref, sg2_ref, st2_ref, w2_ref, b2_ref,
         wsc_ref, bsc_ref, out_ref) = refs
    else:
        (x_ref, ones_ref, exp_ref, nf_ref, nl_ref,
         g1_ref, bt1_ref, sg1_ref, st1_ref, w1_ref, b1_ref,
         g2_ref, bt2_ref, sg2_ref, st2_ref, w2_ref, b2_ref, out_ref) = refs

    x = x_ref[...].astype(jnp.float32)        # (M, W*Cin) lane-dense slab, M = B_blk*H
    ones_blk = ones_ref[...]                  # (B_blk, M) per-element row indicator
    expand = exp_ref[...]                     # (M, B_blk) = indicator^T (per-element broadcast)
    nf = nf_ref[...]                          # (M, 1): 0 at each element's first row
    nl = nl_ref[...]                          # (M, 1): 0 at each element's last row

    # shortcut: real 1x1 conv only when Cin != Cout; identity otherwise (no eye matmul)
    if has_shortcut:
        residual = jnp.dot(x.astype(wsc_ref.dtype), wsc_ref[...],
                           preferred_element_type=jnp.float32) + bsc_ref[...]
    else:
        residual = x

    # norm1 -> SiLU -> conv1
    a1 = _group_norm_silu(x, ones_blk, expand, sg1_ref, st1_ref, g1_ref, bt1_ref)
    y1 = _conv3x3_slab(a1, w1_ref, b1_ref, nf, nl)

    # norm2 -> SiLU -> dropout(eval: identity) -> conv2
    # TODO(synk): training-mode dropout would need pltpu.prng_* based masking.
    a2 = _group_norm_silu(y1, ones_blk, expand, sg2_ref, st2_ref, g2_ref, bt2_ref)
    y2 = _conv3x3_slab(a2, w2_ref, b2_ref, nf, nl)

    out_ref[...] = (y2 + residual).astype(out_ref.dtype)   # lane-dense (M, W*Cout) store


# ----------------------------------- wrapper -------------------------------------

def resblock_pallas(x_nhwc, params, groups_in, groups_out, *,
                    matmul_dtype=jnp.bfloat16, target_rows=256):
    B, H, W, Cin = x_nhwc.shape
    Cout = params["w2"].shape[-1]
    has_shortcut = "w_sc" in params          # Cin != Cout

    # Batch blocking: stack B_blk elements along M so conv matmuls see M = B_blk*H rows
    # (target ~256 on v6e/v7x; pass target_rows=128 on v5e). Largest divisor of B is used.
    max_blk = max(1, target_rows // H)
    b_blk = 1
    for cand in range(1, B + 1):
        if B % cand == 0 and cand <= max_blk:
            b_blk = cand
    M = b_blk * H
    n_blocks = B // b_blk

    # wrapper-side layout plumbing / weight packing (plain XLA, one-time)
    x2d = x_nhwc.reshape(B * H, W * Cin)

    rows = jnp.arange(M)
    elem = rows // H
    ones_blk = (elem[None, :] == jnp.arange(b_blk)[:, None]).astype(jnp.float32)  # (b_blk, M)
    expand = ones_blk.T                                                           # (M, b_blk)
    not_first = (rows % H != 0).astype(jnp.float32).reshape(M, 1)
    not_last = (rows % H != H - 1).astype(jnp.float32).reshape(M, 1)

    sg1, st1 = _gn_factored_mix(Cin, groups_in, H, W)
    sg2, st2 = _gn_factored_mix(Cout, groups_out, H, W)
    w1b = _banded_conv_weight(params["w1"], W).astype(matmul_dtype)   # (3, W*Cin, W*Cout)
    w2b = _banded_conv_weight(params["w2"], W).astype(matmul_dtype)   # (3, W*Cout, W*Cout)
    g1, bt1 = _tile_lanes(params["gamma1"], W), _tile_lanes(params["beta1"], W)
    g2, bt2 = _tile_lanes(params["gamma2"], W), _tile_lanes(params["beta2"], W)
    b1, b2 = _tile_lanes(params["b1"], W), _tile_lanes(params["b2"], W)

    def const_spec(shape):
        idx = lambda i: (0,) * len(shape)
        if n_blocks > 1:
            # grid-invariant block -> single buffer (halves its VMEM footprint; matters on
            # v7x's 64 MiB VMEM at production sizes). With one grid step it is irrelevant.
            return pl.BlockSpec(shape, idx, pipeline_mode=pl.Buffered(1))
        return pl.BlockSpec(shape, idx)

    in_specs = [
        pl.BlockSpec((M, W * Cin), lambda i: (i, 0)),     # x rows (lane-dense slab)
        const_spec((b_blk, M)),                           # per-element row indicator
        const_spec((M, b_blk)),                           # expand (indicator^T)
        const_spec((M, 1)),                               # not-first-row mask
        const_spec((M, 1)),                               # not-last-row mask
        const_spec((1, W * Cin)),                         # gamma1 (lane-tiled)
        const_spec((1, W * Cin)),                         # beta1
        const_spec((W * Cin, Cin)),                       # GN1 kron-factored mixer (SG)
        const_spec((Cin, W * Cin)),                       # GN1 lane expander (ST)
        const_spec((3, W * Cin, W * Cout)),               # conv1 banded weights (3 y-taps)
        const_spec((1, W * Cout)),                        # conv1 bias (tiled)
        const_spec((1, W * Cout)),                        # gamma2
        const_spec((1, W * Cout)),                        # beta2
        const_spec((W * Cout, Cout)),                     # GN2 mixer
        const_spec((Cout, W * Cout)),                     # GN2 lane expander
        const_spec((3, W * Cout, W * Cout)),              # conv2 banded weights
        const_spec((1, W * Cout)),                        # conv2 bias
    ]
    args = [x2d, ones_blk, expand, not_first, not_last,
            g1, bt1, sg1, st1, w1b, b1, g2, bt2, sg2, st2, w2b, b2]
    if has_shortcut:
        wscb = _banded_pointwise_weight(params["w_sc"], W).astype(matmul_dtype)
        bsc = _tile_lanes(params["b_sc"], W)
        in_specs += [const_spec((W * Cin, W * Cout)), const_spec((1, W * Cout))]
        args += [wscb, bsc]

    flops = (2 * B * H * (W * Cin) * (W * Cout) * 3          # conv1 (3 banded matmuls)
             + 2 * B * H * (W * Cout) * (W * Cout) * 3       # conv2
             + (2 * B * H * (W * Cin) * (W * Cout) if has_shortcut else 0)
             + 4 * B * H * (W * Cin) + 4 * B * H * (W * Cout))   # GN stat matmuls (approx)
    transcendentals = B * H * W * (Cin + Cout)                # one tanh per SiLU element
    bytes_accessed = int(B * H * W * (Cin + Cout) * 4
                         + sum(int(a.size) * a.dtype.itemsize for a in args[1:]))

    kernel = pl.pallas_call(
        functools.partial(_resblock_kernel, has_shortcut),
        out_shape=jax.ShapeDtypeStruct((B * H, W * Cout), jnp.float32),
        grid_spec=pltpu.PrefetchScalarGridSpec(
            num_scalar_prefetch=0,
            grid=(n_blocks,),
            in_specs=in_specs,
            out_specs=pl.BlockSpec((M, W * Cout), lambda i: (i, 0)),
        ),
        # batch blocks are independent -> parallel axis (megacore split on v7x).
        # vmem_limit_bytes left at default: worst block set here is well under 16 MiB.
        compiler_params=pltpu.CompilerParams(dimension_semantics=("parallel",)),
        cost_estimate=pl.CostEstimate(flops=int(flops),
                                      transcendentals=int(transcendentals),
                                      bytes_accessed=bytes_accessed),
    )
    out2d = kernel(*args)
    return out2d.reshape(B, H, W, Cout)


# ---------------- pure-JAX reference (for the correctness check) ----------------

def _silu(x):
    return x * jax.nn.sigmoid(x)


def _ref_groupnorm(x, gamma, beta, groups):
    B, H, W, C = x.shape
    xg = x.reshape(B, H, W, groups, C // groups)
    mean = xg.mean(axis=(1, 2, 4), keepdims=True)
    var = ((xg - mean) ** 2).mean(axis=(1, 2, 4), keepdims=True)
    xn = ((xg - mean) / jnp.sqrt(var + EPS)).reshape(B, H, W, C)
    return xn * gamma.reshape(1, 1, 1, C) + beta.reshape(1, 1, 1, C)


def _ref_conv(x, w_hwio, b):
    y = lax.conv_general_dilated(x, w_hwio, (1, 1), "SAME",
                                 dimension_numbers=("NHWC", "HWIO", "NHWC"),
                                 precision=lax.Precision.HIGHEST)
    return y + b.reshape(1, 1, 1, -1)


def resblock_ref(x_nhwc, params, groups_in, groups_out):
    Cin = x_nhwc.shape[-1]
    Cout = params["w2"].shape[-1]
    if "w_sc" in params:
        residual = _ref_conv(x_nhwc, params["w_sc"].reshape(1, 1, Cin, Cout), params["b_sc"])
    else:
        residual = x_nhwc
    h = _ref_groupnorm(x_nhwc, params["gamma1"], params["beta1"], groups_in)
    h = _silu(h)
    h = _ref_conv(h, params["w1"], params["b1"])
    h = _ref_groupnorm(h, params["gamma2"], params["beta2"], groups_out)
    h = _silu(h)
    h = _ref_conv(h, params["w2"], params["b2"])
    return h + residual


# --------------------------------- driver -----------------------------------

if __name__ == "__main__":
    B, Cin, H, W = 2, 4, 16, 16
    Cout = 8
    groups_in = _compute_groups(Cin)     # = 1  (Cin < 8)
    groups_out = _compute_groups(Cout)   # = 8

    key = jax.random.PRNGKey(0)
    ks = jax.random.split(key, 10)

    # deterministic synthetic parameters (shapes follow nn.Module __init__)
    params = {
        "gamma1": 1.0 + 0.1 * jax.random.normal(ks[0], (1, Cin), jnp.float32),
        "beta1":  0.1 * jax.random.normal(ks[1], (1, Cin), jnp.float32),
        "w1":     0.2 * jax.random.normal(ks[2], (3, 3, Cin, Cout), jnp.float32),
        "b1":     0.1 * jax.random.normal(ks[3], (1, Cout), jnp.float32),
        "gamma2": 1.0 + 0.1 * jax.random.normal(ks[4], (1, Cout), jnp.float32),
        "beta2":  0.1 * jax.random.normal(ks[5], (1, Cout), jnp.float32),
        "w2":     0.2 * jax.random.normal(ks[6], (3, 3, Cout, Cout), jnp.float32),
        "b2":     0.1 * jax.random.normal(ks[7], (1, Cout), jnp.float32),
    }
    if Cin != Cout:
        # real 1x1-conv shortcut (identity shortcut needs no parameters at all)
        params["w_sc"] = 0.3 * jax.random.normal(ks[8], (Cin, Cout), jnp.float32)
        params["b_sc"] = 0.1 * jax.random.normal(ks[9], (1, Cout), jnp.float32)

    # PyTorch-style NCHW input, transposed to the kernel's NHWC layout
    x_nchw = jax.random.normal(key, (B, Cin, H, W), jnp.float32)
    x_nhwc = jnp.transpose(x_nchw, (0, 2, 3, 1))

    ref = jax.block_until_ready(resblock_ref(x_nhwc, params, groups_in, groups_out))

    # exact-semantics path (f32 MXU operands)
    out_f32 = jax.block_until_ready(
        resblock_pallas(x_nhwc, params, groups_in, groups_out, matmul_dtype=jnp.float32))
    assert out_f32.shape == (B, H, W, Cout)
    err_f32 = float(jnp.max(jnp.abs(out_f32 - ref)))
    if not jnp.allclose(out_f32, ref, rtol=1e-3, atol=1e-3):
        raise AssertionError(f"f32 Pallas ResBlock mismatch vs JAX reference (max_err={err_f32})")

    # default fast path (bf16 MXU operands, f32 accumulation) -> looser parity expected
    out_bf16 = jax.block_until_ready(resblock_pallas(x_nhwc, params, groups_in, groups_out))
    assert out_bf16.shape == (B, H, W, Cout)
    err_bf16 = float(jnp.max(jnp.abs(out_bf16 - ref)))
    if err_bf16 > 5e-2:
        raise AssertionError(f"bf16 Pallas ResBlock mismatch vs JAX reference (max_err={err_bf16})")

    print("KERNEL_OK")
</pallas_src>

<mosaic_0001>
module attributes {stable_mosaic.version = 11 : i64} {
  func.func @_resblock_kernel(%arg0: i32, %arg1: memref<32x64xf32, #tpu.memory_space<vmem>>, %arg2: memref<2x32xf32, #tpu.memory_space<vmem>>, %arg3: memref<32x2xf32, #tpu.memory_space<vmem>>, %arg4: memref<32x1xf32, #tpu.memory_space<vmem>>, %arg5: memref<32x1xf32, #tpu.memory_space<vmem>>, %arg6: memref<1x64xf32, #tpu.memory_space<vmem>>, %arg7: memref<1x64xf32, #tpu.memory_space<vmem>>, %arg8: memref<64x4xf32, #tpu.memory_space<vmem>>, %arg9: memref<4x64xf32, #tpu.memory_space<vmem>>, %arg10: memref<3x64x128xf32, #tpu.memory_space<vmem>>, %arg11: memref<1x128xf32, #tpu.memory_space<vmem>>, %arg12: memref<1x128xf32, #tpu.memory_space<vmem>>, %arg13: memref<1x128xf32, #tpu.memory_space<vmem>>, %arg14: memref<128x8xf32, #tpu.memory_space<vmem>>, %arg15: memref<8x128xf32, #tpu.memory_space<vmem>>, %arg16: memref<3x128x128xf32, #tpu.memory_space<vmem>>, %arg17: memref<1x128xf32, #tpu.memory_space<vmem>>, %arg18: memref<64x128xf32, #tpu.memory_space<vmem>>, %arg19: memref<1x128xf32, #tpu.memory_space<vmem>>, %arg20: memref<32x128xf32, #tpu.memory_space<vmem>>) attributes {dimension_semantics = [#tpu.dimension_semantics<parallel>], iteration_bounds = array<i64: 1>, scalar_prefetch = 0 : i64, scratch_operands = 0 : i64, tpu.core_type = #tpu.core_type<tc>, window_params = [{transform_indices = @transform_0, window_bounds = array<i64: 32, 64>}, {pipeline_mode = #tpu.pipeline_mode<synchronous>, transform_indices = @transform_1, window_bounds = array<i64: 2, 32>}, {pipeline_mode = #tpu.pipeline_mode<synchronous>, transform_indices = @transform_2, window_bounds = array<i64: 32, 2>}, {pipeline_mode = #tpu.pipeline_mode<synchronous>, transform_indices = @transform_3, window_bounds = array<i64: 32, 1>}, {pipeline_mode = #tpu.pipeline_mode<synchronous>, transform_indices = @transform_4, window_bounds = array<i64: 32, 1>}, {pipeline_mode = #tpu.pipeline_mode<synchronous>, transform_indices = @transform_5, window_bounds = array<i64: 1, 64>}, {pipeline_mode = #tpu.pipeline_mode<synchronous>, transform_indices = @transform_6, window_bounds = array<i64: 1, 64>}, {pipeline_mode = #tpu.pipeline_mode<synchronous>, transform_indices = @transform_7, window_bounds = array<i64: 64, 4>}, {pipeline_mode = #tpu.pipeline_mode<synchronous>, transform_indices = @transform_8, window_bounds = array<i64: 4, 64>}, {pipeline_mode = #tpu.pipeline_mode<synchronous>, transform_indices = @transform_9, window_bounds = array<i64: 3, 64, 128>}, {pipeline_mode = #tpu.pipeline_mode<synchronous>, transform_indices = @transform_10, window_bounds = array<i64: 1, 128>}, {pipeline_mode = #tpu.pipeline_mode<synchronous>, transform_indices = @transform_11, window_bounds = array<i64: 1, 128>}, {pipeline_mode = #tpu.pipeline_mode<synchronous>, transform_indices = @transform_12, window_bounds = array<i64: 1, 128>}, {pipeline_mode = #tpu.pipeline_mode<synchronous>, transform_indices = @transform_13, window_bounds = array<i64: 128, 8>}, {pipeline_mode = #tpu.pipeline_mode<synchronous>, transform_indices = @transform_14, window_bounds = array<i64: 8, 128>}, {pipeline_mode = #tpu.pipeline_mode<synchronous>, transform_indices = @transform_15, window_bounds = array<i64: 3, 128, 128>}, {pipeline_mode = #tpu.pipeline_mode<synchronous>, transform_indices = @transform_16, window_bounds = array<i64: 1, 128>}, {pipeline_mode = #tpu.pipeline_mode<synchronous>, transform_indices = @transform_17, window_bounds = array<i64: 64, 128>}, {pipeline_mode = #tpu.pipeline_mode<synchronous>, transform_indices = @transform_18, window_bounds = array<i64: 1, 128>}, {transform_indices = @transform_19, window_bounds = array<i64: 32, 128>}]} {
    %c0 = arith.constant 0 : index
    %c0_0 = arith.constant 0 : index
    %0 = vector.load %arg1[%c0, %c0_0] : memref<32x64xf32, #tpu.memory_space<vmem>>, vector<32x64xf32>
    %c0_1 = arith.constant 0 : index
    %c0_2 = arith.constant 0 : index
    %1 = vector.load %arg2[%c0_1, %c0_2] : memref<2x32xf32, #tpu.memory_space<vmem>>, vector<2x32xf32>
    %c0_3 = arith.constant 0 : index
    %c0_4 = arith.constant 0 : index
    %2 = vector.load %arg3[%c0_3, %c0_4] : memref<32x2xf32, #tpu.memory_space<vmem>>, vector<32x2xf32>
    %c0_5 = arith.constant 0 : index
    %c0_6 = arith.constant 0 : index
    %3 = vector.load %arg4[%c0_5, %c0_6] : memref<32x1xf32, #tpu.memory_space<vmem>>, vector<32x1xf32>
    %c0_7 = arith.constant 0 : index
    %c0_8 = arith.constant 0 : index
    %4 = vector.load %arg5[%c0_7, %c0_8] : memref<32x1xf32, #tpu.memory_space<vmem>>, vector<32x1xf32>
    %c0_9 = arith.constant 0 : index
    %c0_10 = arith.constant 0 : index
    %5 = vector.load %arg18[%c0_9, %c0_10] : memref<64x128xf32, #tpu.memory_space<vmem>>, vector<64x128xf32>
    %cst = arith.constant dense<0.000000e+00> : vector<32x128xf32>
    %6 = tpu.matmul %0, %5, %cst {dimension_numbers = #tpu.dot_dimension_numbers<[1], [0], [0], [1], [0, 0, 1, 1], [], []>} : vector<32x64xf32>, vector<64x128xf32>, vector<32x128xf32> -> vector<32x128xf32>
    %c0_11 = arith.constant 0 : index
    %c0_12 = arith.constant 0 : index
    %7 = vector.load %arg19[%c0_11, %c0_12] : memref<1x128xf32, #tpu.memory_space<vmem>>, vector<1x128xf32>
    %8 = vector.broadcast %7 : vector<1x128xf32> to vector<32x128xf32>
    %9 = arith.addf %6, %8 : vector<32x128xf32>
    %cst_13 = arith.constant dense<0.000000e+00> : vector<2x64xf32>
    %10 = tpu.matmul %1, %0, %cst_13 {dimension_numbers = #tpu.dot_dimension_numbers<[1], [0], [0], [1], [0, 0, 1, 1], [], []>} : vector<2x32xf32>, vector<32x64xf32>, vector<2x64xf32> -> vector<2x64xf32>
    %c0_14 = arith.constant 0 : index
    %c0_15 = arith.constant 0 : index
    %11 = vector.load %arg8[%c0_14, %c0_15] : memref<64x4xf32, #tpu.memory_space<vmem>>, vector<64x4xf32>
    %cst_16 = arith.constant dense<0.000000e+00> : vector<2x4xf32>
    %12 = tpu.matmul %10, %11, %cst_16 {dimension_numbers = #tpu.dot_dimension_numbers<[1], [0], [0], [1], [0, 0, 1, 1], [], []>} : vector<2x64xf32>, vector<64x4xf32>, vector<2x4xf32> -> vector<2x4xf32>
    %c0_17 = arith.constant 0 : index
    %c0_18 = arith.constant 0 : index
    %13 = vector.load %arg9[%c0_17, %c0_18] : memref<4x64xf32, #tpu.memory_space<vmem>>, vector<4x64xf32>
    %cst_19 = arith.constant dense<0.000000e+00> : vector<2x64xf32>
    %14 = tpu.matmul %12, %13, %cst_19 {dimension_numbers = #tpu.dot_dimension_numbers<[1], [0], [0], [1], [0, 0, 1, 1], [], []>} : vector<2x4xf32>, vector<4x64xf32>, vector<2x64xf32> -> vector<2x64xf32>
    %cst_20 = arith.constant dense<0.000000e+00> : vector<32x64xf32>
    %15 = tpu.matmul %2, %14, %cst_20 {dimension_numbers = #tpu.dot_dimension_numbers<[1], [0], [0], [1], [0, 0, 1, 1], [], []>} : vector<32x2xf32>, vector<2x64xf32>, vector<32x64xf32> -> vector<32x64xf32>
    %16 = arith.subf %0, %15 : vector<32x64xf32>
    %17 = arith.mulf %16, %16 : vector<32x64xf32>
    %cst_21 = arith.constant dense<0.000000e+00> : vector<2x64xf32>
    %18 = tpu.matmul %1, %17, %cst_21 {dimension_numbers = #tpu.dot_dimension_numbers<[1], [0], [0], [1], [0, 0, 1, 1], [], []>} : vector<2x32xf32>, vector<32x64xf32>, vector<2x64xf32> -> vector<2x64xf32>
    %c0_22 = arith.constant 0 : index
    %c0_23 = arith.constant 0 : index
    %19 = vector.load %arg8[%c0_22, %c0_23] : memref<64x4xf32, #tpu.memory_space<vmem>>, vector<64x4xf32>
    %cst_24 = arith.constant dense<0.000000e+00> : vector<2x4xf32>
    %20 = tpu.matmul %18, %19, %cst_24 {dimension_numbers = #tpu.dot_dimension_numbers<[1], [0], [0], [1], [0, 0, 1, 1], [], []>} : vector<2x64xf32>, vector<64x4xf32>, vector<2x4xf32> -> vector<2x4xf32>
    %c0_25 = arith.constant 0 : index
    %c0_26 = arith.constant 0 : index
    %21 = vector.load %arg9[%c0_25, %c0_26] : memref<4x64xf32, #tpu.memory_space<vmem>>, vector<4x64xf32>
    %cst_27 = arith.constant dense<0.000000e+00> : vector<2x64xf32>
    %22 = tpu.matmul %20, %21, %cst_27 {dimension_numbers = #tpu.dot_dimension_numbers<[1], [0], [0], [1], [0, 0, 1, 1], [], []>} : vector<2x4xf32>, vector<4x64xf32>, vector<2x64xf32> -> vector<2x64xf32>
    %cst_28 = arith.constant 9.99999974E-6 : f32
    %23 = vector.broadcast %cst_28 : f32 to vector<2x64xf32>
    %24 = arith.addf %22, %23 : vector<2x64xf32>
    %25 = math.rsqrt %24 : vector<2x64xf32>
    %c0_29 = arith.constant 0 : index
    %c0_30 = arith.constant 0 : index
    %26 = vector.load %arg6[%c0_29, %c0_30] : memref<1x64xf32, #tpu.memory_space<vmem>>, vector<1x64xf32>
    %27 = vector.broadcast %26 : vector<1x64xf32> to vector<2x64xf32>
    %28 = arith.mulf %25, %27 : vector<2x64xf32>
    %cst_31 = arith.constant dense<0.000000e+00> : vector<32x64xf32>
    %29 = tpu.matmul %2, %28, %cst_31 {dimension_numbers = #tpu.dot_dimension_numbers<[1], [0], [0], [1], [0, 0, 1, 1], [], []>} : vector<32x2xf32>, vector<2x64xf32>, vector<32x64xf32> -> vector<32x64xf32>
    %30 = arith.mulf %16, %29 : vector<32x64xf32>
    %c0_32 = arith.constant 0 : index
    %c0_33 = arith.constant 0 : index
    %31 = vector.load %arg7[%c0_32, %c0_33] : memref<1x64xf32, #tpu.memory_space<vmem>>, vector<1x64xf32>
    %32 = vector.broadcast %31 : vector<1x64xf32> to vector<32x64xf32>
    %33 = arith.addf %30, %32 : vector<32x64xf32>
    %cst_34 = arith.constant 5.000000e-01 : f32
    %34 = vector.broadcast %cst_34 : f32 to vector<32x64xf32>
    %35 = arith.mulf %34, %33 : vector<32x64xf32>
    %cst_35 = arith.constant 5.000000e-01 : f32
    %36 = vector.broadcast %cst_35 : f32 to vector<32x64xf32>
    %37 = arith.mulf %36, %33 : vector<32x64xf32>
    %38 = math.tanh %37 : vector<32x64xf32>
    %cst_36 = arith.constant 1.000000e+00 : f32
    %39 = vector.broadcast %cst_36 : f32 to vector<32x64xf32>
    %40 = arith.addf %39, %38 : vector<32x64xf32>
    %41 = arith.mulf %35, %40 : vector<32x64xf32>
    %cst_37 = arith.constant 0.000000e+00 : f32
    %42 = vector.broadcast %cst_37 : f32 to vector<1x64xf32>
    %43 = vector.extract_strided_slice %41 {offsets = [0, 0], sizes = [31, 64], strides = [1, 1]} : vector<32x64xf32> to vector<31x64xf32>
    %44 = tpu.concatenate %42, %43 in 0 : vector<1x64xf32>, vector<31x64xf32> -> vector<32x64xf32>
    %45 = vector.broadcast %3 : vector<32x1xf32> to vector<32x64xf32>
    %46 = arith.mulf %45, %44 : vector<32x64xf32>
    %47 = vector.extract_strided_slice %41 {offsets = [1, 0], sizes = [31, 64], strides = [1, 1]} : vector<32x64xf32> to vector<31x64xf32>
    %48 = tpu.concatenate %47, %42 in 0 : vector<31x64xf32>, vector<1x64xf32> -> vector<32x64xf32>
    %49 = vector.broadcast %4 : vector<32x1xf32> to vector<32x64xf32>
    %50 = arith.mulf %49, %48 : vector<32x64xf32>
    %c0_38 = arith.constant 0 : index
    %c0_39 = arith.constant 0 : index
    %c0_40 = arith.constant 0 : index
    %51 = vector.load %arg10[%c0_38, %c0_39, %c0_40] : memref<3x64x128xf32, #tpu.memory_space<vmem>>, vector<1x64x128xf32>
    %52 = vector.shape_cast %51 : vector<1x64x128xf32> to vector<64x128xf32>
    %cst_41 = arith.constant dense<0.000000e+00> : vector<32x128xf32>
    %53 = tpu.matmul %46, %52, %cst_41 {dimension_numbers = #tpu.dot_dimension_numbers<[1], [0], [0], [1], [0, 0, 1, 1], [], []>} : vector<32x64xf32>, vector<64x128xf32>, vector<32x128xf32> -> vector<32x128xf32>
    %c1 = arith.constant 1 : index
    %c0_42 = arith.constant 0 : index
    %c0_43 = arith.constant 0 : index
    %54 = vector.load %arg10[%c1, %c0_42, %c0_43] : memref<3x64x128xf32, #tpu.memory_space<vmem>>, vector<1x64x128xf32>
    %55 = vector.shape_cast %54 : vector<1x64x128xf32> to vector<64x128xf32>
    %cst_44 = arith.constant dense<0.000000e+00> : vector<32x128xf32>
    %56 = tpu.matmul %41, %55, %cst_44 {dimension_numbers = #tpu.dot_dimension_numbers<[1], [0], [0], [1], [0, 0, 1, 1], [], []>} : vector<32x64xf32>, vector<64x128xf32>, vector<32x128xf32> -> vector<32x128xf32>
    %57 = arith.addf %53, %56 : vector<32x128xf32>
    %c2 = arith.constant 2 : index
    %c0_45 = arith.constant 0 : index
    %c0_46 = arith.constant 0 : index
    %58 = vector.load %arg10[%c2, %c0_45, %c0_46] : memref<3x64x128xf32, #tpu.memory_space<vmem>>, vector<1x64x128xf32>
    %59 = vector.shape_cast %58 : vector<1x64x128xf32> to vector<64x128xf32>
    %cst_47 = arith.constant dense<0.000000e+00> : vector<32x128xf32>
    %60 = tpu.matmul %50, %59, %cst_47 {dimension_numbers = #tpu.dot_dimension_numbers<[1], [0], [0], [1], [0, 0, 1, 1], [], []>} : vector<32x64xf32>, vector<64x128xf32>, vector<32x128xf32> -> vector<32x128xf32>
    %61 = arith.addf %57, %60 : vector<32x128xf32>
    %c0_48 = arith.constant 0 : index
    %c0_49 = arith.constant 0 : index
    %62 = vector.load %arg11[%c0_48, %c0_49] : memref<1x128xf32, #tpu.memory_space<vmem>>, vector<1x128xf32>
    %63 = vector.broadcast %62 : vector<1x128xf32> to vector<32x128xf32>
    %64 = arith.addf %61, %63 : vector<32x128xf32>
    %cst_50 = arith.constant dense<0.000000e+00> : vector<2x128xf32>
    %65 = tpu.matmul %1, %64, %cst_50 {dimension_numbers = #tpu.dot_dimension_numbers<[1], [0], [0], [1], [0, 0, 1, 1], [], []>} : vector<2x32xf32>, vector<32x128xf32>, vector<2x128xf32> -> vector<2x128xf32>
    %c0_51 = arith.constant 0 : index
    %c0_52 = arith.constant 0 : index
    %66 = vector.load %arg14[%c0_51, %c0_52] : memref<128x8xf32, #tpu.memory_space<vmem>>, vector<128x8xf32>
    %cst_53 = arith.constant dense<0.000000e+00> : vector<2x8xf32>
    %67 = tpu.matmul %65, %66, %cst_53 {dimension_numbers = #tpu.dot_dimension_numbers<[1], [0], [0], [1], [0, 0, 1, 1], [], []>} : vector<2x128xf32>, vector<128x8xf32>, vector<2x8xf32> -> vector<2x8xf32>
    %c0_54 = arith.constant 0 : index
    %c0_55 = arith.constant 0 : index
    %68 = vector.load %arg15[%c0_54, %c0_55] : memref<8x128xf32, #tpu.memory_space<vmem>>, vector<8x128xf32>
    %cst_56 = arith.constant dense<0.000000e+00> : vector<2x128xf32>
    %69 = tpu.matmul %67, %68, %cst_56 {dimension_numbers = #tpu.dot_dimension_numbers<[1], [0], [0], [1], [0, 0, 1, 1], [], []>} : vector<2x8xf32>, vector<8x128xf32>, vector<2x128xf32> -> vector<2x128xf32>
    %cst_57 = arith.constant dense<0.000000e+00> : vector<32x128xf32>
    %70 = tpu.matmul %2, %69, %cst_57 {dimension_numbers = #tpu.dot_dimension_numbers<[1], [0], [0], [1], [0, 0, 1, 1], [], []>} : vector<32x2xf32>, vector<2x128xf32>, vector<32x128xf32> -> vector<32x128xf32>
    %71 = arith.subf %64, %70 : vector<32x128xf32>
    %72 = arith.mulf %71, %71 : vector<32x128xf32>
    %cst_58 = arith.constant dense<0.000000e+00> : vector<2x128xf32>
    %73 = tpu.matmul %1, %72, %cst_58 {dimension_numbers = #tpu.dot_dimension_numbers<[1], [0], [0], [1], [0, 0, 1, 1], [], []>} : vector<2x32xf32>, vector<32x128xf32>, vector<2x128xf32> -> vector<2x128xf32>
    %c0_59 = arith.constant 0 : index
    %c0_60 = arith.constant 0 : index
    %74 = vector.load %arg14[%c0_59, %c0_60] : memref<128x8xf32, #tpu.memory_space<vmem>>, vector<128x8xf32>
    %cst_61 = arith.constant dense<0.000000e+00> : vector<2x8xf32>
    %75 = tpu.matmul %73, %74, %cst_61 {dimension_numbers = #tpu.dot_dimension_numbers<[1], [0], [0], [1], [0, 0, 1, 1], [], []>} : vector<2x128xf32>, vector<128x8xf32>, vector<2x8xf32> -> vector<2x8xf32>
    %c0_62 = arith.constant 0 : index
    %c0_63 = arith.constant 0 : index
    %76 = vector.load %arg15[%c0_62, %c0_63] : memref<8x128xf32, #tpu.memory_space<vmem>>, vector<8x128xf32>
    %cst_64 = arith.constant dense<0.000000e+00> : vector<2x128xf32>
    %77 = tpu.matmul %75, %76, %cst_64 {dimension_numbers = #tpu.dot_dimension_numbers<[1], [0], [0], [1], [0, 0, 1, 1], [], []>} : vector<2x8xf32>, vector<8x128xf32>, vector<2x128xf32> -> vector<2x128xf32>
    %cst_65 = arith.constant 9.99999974E-6 : f32
    %78 = vector.broadcast %cst_65 : f32 to vector<2x128xf32>
    %79 = arith.addf %77, %78 : vector<2x128xf32>
    %80 = math.rsqrt %79 : vector<2x128xf32>
    %c0_66 = arith.constant 0 : index
    %c0_67 = arith.constant 0 : index
    %81 = vector.load %arg12[%c0_66, %c0_67] : memref<1x128xf32, #tpu.memory_space<vmem>>, vector<1x128xf32>
    %82 = vector.broadcast %81 : vector<1x128xf32> to vector<2x128xf32>
    %83 = arith.mulf %80, %82 : vector<2x128xf32>
    %cst_68 = arith.constant dense<0.000000e+00> : vector<32x128xf32>
    %84 = tpu.matmul %2, %83, %cst_68 {dimension_numbers = #tpu.dot_dimension_numbers<[1], [0], [0], [1], [0, 0, 1, 1], [], []>} : vector<32x2xf32>, vector<2x128xf32>, vector<32x128xf32> -> vector<32x128xf32>
    %85 = arith.mulf %71, %84 : vector<32x128xf32>
    %c0_69 = arith.constant 0 : index
    %c0_70 = arith.constant 0 : index
    %86 = vector.load %arg13[%c0_69, %c0_70] : memref<1x128xf32, #tpu.memory_space<vmem>>, vector<1x128xf32>
    %87 = vector.broadcast %86 : vector<1x128xf32> to vector<32x128xf32>
    %88 = arith.addf %85, %87 : vector<32x128xf32>
    %cst_71 = arith.constant 5.000000e-01 : f32
    %89 = vector.broadcast %cst_71 : f32 to vector<32x128xf32>
    %90 = arith.mulf %89, %88 : vector<32x128xf32>
    %cst_72 = arith.constant 5.000000e-01 : f32
    %91 = vector.broadcast %cst_72 : f32 to vector<32x128xf32>
    %92 = arith.mulf %91, %88 : vector<32x128xf32>
    %93 = math.tanh %92 : vector<32x128xf32>
    %cst_73 = arith.constant 1.000000e+00 : f32
    %94 = vector.broadcast %cst_73 : f32 to vector<32x128xf32>
    %95 = arith.addf %94, %93 : vector<32x128xf32>
    %96 = arith.mulf %90, %95 : vector<32x128xf32>
    %cst_74 = arith.constant 0.000000e+00 : f32
    %97 = vector.broadcast %cst_74 : f32 to vector<1x128xf32>
    %98 = vector.extract_strided_slice %96 {offsets = [0, 0], sizes = [31, 128], strides = [1, 1]} : vector<32x128xf32> to vector<31x128xf32>
    %99 = tpu.concatenate %97, %98 in 0 : vector<1x128xf32>, vector<31x128xf32> -> vector<32x128xf32>
    %100 = vector.broadcast %3 : vector<32x1xf32> to vector<32x128xf32>
    %101 = arith.mulf %100, %99 : vector<32x128xf32>
    %102 = vector.extract_strided_slice %96 {offsets = [1, 0], sizes = [31, 128], strides = [1, 1]} : vector<32x128xf32> to vector<31x128xf32>
    %103 = tpu.concatenate %102, %97 in 0 : vector<31x128xf32>, vector<1x128xf32> -> vector<32x128xf32>
    %104 = vector.broadcast %4 : vector<32x1xf32> to vector<32x128xf32>
    %105 = arith.mulf %104, %103 : vector<32x128xf32>
    %c0_75 = arith.constant 0 : index
    %c0_76 = arith.constant 0 : index
    %c0_77 = arith.constant 0 : index
    %106 = vector.load %arg16[%c0_75, %c0_76, %c0_77] : memref<3x128x128xf32, #tpu.memory_space<vmem>>, vector<1x128x128xf32>
    %107 = vector.shape_cast %106 : vector<1x128x128xf32> to vector<128x128xf32>
    %cst_78 = arith.constant dense<0.000000e+00> : vector<32x128xf32>
    %108 = tpu.matmul %101, %107, %cst_78 {dimension_numbers = #tpu.dot_dimension_numbers<[1], [0], [0], [1], [0, 0, 1, 1], [], []>} : vector<32x128xf32>, vector<128x128xf32>, vector<32x128xf32> -> vector<32x128xf32>
    %c1_79 = arith.constant 1 : index
    %c0_80 = arith.constant 0 : index
    %c0_81 = arith.constant 0 : index
    %109 = vector.load %arg16[%c1_79, %c0_80, %c0_81] : memref<3x128x128xf32, #tpu.memory_space<vmem>>, vector<1x128x128xf32>
    %110 = vector.shape_cast %109 : vector<1x128x128xf32> to vector<128x128xf32>
    %cst_82 = arith.constant dense<0.000000e+00> : vector<32x128xf32>
    %111 = tpu.matmul %96, %110, %cst_82 {dimension_numbers = #tpu.dot_dimension_numbers<[1], [0], [0], [1], [0, 0, 1, 1], [], []>} : vector<32x128xf32>, vector<128x128xf32>, vector<32x128xf32> -> vector<32x128xf32>
    %112 = arith.addf %108, %111 : vector<32x128xf32>
    %c2_83 = arith.constant 2 : index
    %c0_84 = arith.constant 0 : index
    %c0_85 = arith.constant 0 : index
    %113 = vector.load %arg16[%c2_83, %c0_84, %c0_85] : memref<3x128x128xf32, #tpu.memory_space<vmem>>, vector<1x128x128xf32>
    %114 = vector.shape_cast %113 : vector<1x128x128xf32> to vector<128x128xf32>
    %cst_86 = arith.constant dense<0.000000e+00> : vector<32x128xf32>
    %115 = tpu.matmul %105, %114, %cst_86 {dimension_numbers = #tpu.dot_dimension_numbers<[1], [0], [0], [1], [0, 0, 1, 1], [], []>} : vector<32x128xf32>, vector<128x128xf32>, vector<32x128xf32> -> vector<32x128xf32>
    %116 = arith.addf %112, %115 : vector<32x128xf32>
    %c0_87 = arith.constant 0 : index
    %c0_88 = arith.constant 0 : index
    %117 = vector.load %arg17[%c0_87, %c0_88] : memref<1x128xf32, #tpu.memory_space<vmem>>, vector<1x128xf32>
    %118 = vector.broadcast %117 : vector<1x128xf32> to vector<32x128xf32>
    %119 = arith.addf %116, %118 : vector<32x128xf32>
    %120 = arith.addf %119, %9 : vector<32x128xf32>
    %c0_89 = arith.constant 0 : index
    %c0_90 = arith.constant 0 : index
    %121 = vector.load %arg20[%c0_89, %c0_90] : memref<32x128xf32, #tpu.memory_space<vmem>>, vector<32x128xf32>
    tpu.vector_store %arg20[%c0_89, %c0_90], %120 {strides = array<i32>} : memref<32x128xf32, #tpu.memory_space<vmem>>, vector<32x128xf32>,
    return
  }
  func.func @transform_0(%arg0: i32) -> (i32, i32) {
    %c0_i32 = arith.constant 0 : i32
    %c0_i32_0 = arith.constant 0 : i32
    return %arg0, %c0_i32 : i32, i32
  }
  func.func @transform_1(%arg0: i32) -> (i32, i32) {
    %c0_i32 = arith.constant 0 : i32
    %c0_i32_0 = arith.constant 0 : i32
    %c0_i32_1 = arith.constant 0 : i32
    return %c0_i32, %c0_i32_0 : i32, i32
  }
  func.func @transform_2(%arg0: i32) -> (i32, i32) {
    %c0_i32 = arith.constant 0 : i32
    %c0_i32_0 = arith.constant 0 : i32
    %c0_i32_1 = arith.constant 0 : i32
    return %c0_i32, %c0_i32_0 : i32, i32
  }
  func.func @transform_3(%arg0: i32) -> (i32, i32) {
    %c0_i32 = arith.constant 0 : i32
    %c0_i32_0 = arith.constant 0 : i32
    %c0_i32_1 = arith.constant 0 : i32
    return %c0_i32, %c0_i32_0 : i32, i32
  }
  func.func @transform_4(%arg0: i32) -> (i32, i32) {
    %c0_i32 = arith.constant 0 : i32
    %c0_i32_0 = arith.constant 0 : i32
    %c0_i32_1 = arith.constant 0 : i32
    return %c0_i32, %c0_i32_0 : i32, i32
  }
  func.func @transform_5(%arg0: i32) -> (i32, i32) {
    %c0_i32 = arith.constant 0 : i32
    %c0_i32_0 = arith.constant 0 : i32
    %c0_i32_1 = arith.constant 0 : i32
    return %c0_i32, %c0_i32_0 : i32, i32
  }
  func.func @transform_6(%arg0: i32) -> (i32, i32) {
    %c0_i32 = arith.constant 0 : i32
    %c0_i32_0 = arith.constant 0 : i32
    %c0_i32_1 = arith.constant 0 : i32
    return %c0_i32, %c0_i32_0 : i32, i32
  }
  func.func @transform_7(%arg0: i32) -> (i32, i32) {
    %c0_i32 = arith.constant 0 : i32
    %c0_i32_0 = arith.constant 0 : i32
    %c0_i32_1 = arith.constant 0 : i32
    return %c0_i32, %c0_i32_0 : i32, i32
  }
  func.func @transform_8(%arg0: i32) -> (i32, i32) {
    %c0_i32 = arith.constant 0 : i32
    %c0_i32_0 = arith.constant 0 : i32
    %c0_i32_1 = arith.constant 0 : i32
    return %c0_i32, %c0_i32_0 : i32, i32
  }
  func.func @transform_9(%arg0: i32) -> (i32, i32, i32) {
    %c0_i32 = arith.constant 0 : i32
    %c0_i32_0 = arith.constant 0 : i32
    %c0_i32_1 = arith.constant 0 : i32
    %c0_i32_2 = arith.constant 0 : i32
    return %c0_i32, %c0_i32_0, %c0_i32_1 : i32, i32, i32
  }
  func.func @transform_10(%arg0: i32) -> (i32, i32) {
    %c0_i32 = arith.constant 0 : i32
    %c0_i32_0 = arith.constant 0 : i32
    %c0_i32_1 = arith.constant 0 : i32
    return %c0_i32, %c0_i32_0 : i32, i32
  }
  func.func @transform_11(%arg0: i32) -> (i32, i32) {
    %c0_i32 = arith.constant 0 : i32
    %c0_i32_0 = arith.constant 0 : i32
    %c0_i32_1 = arith.constant 0 : i32
    return %c0_i32, %c0_i32_0 : i32, i32
  }
  func.func @transform_12(%arg0: i32) -> (i32, i32) {
    %c0_i32 = arith.constant 0 : i32
    %c0_i32_0 = arith.constant 0 : i32
    %c0_i32_1 = arith.constant 0 : i32
    return %c0_i32, %c0_i32_0 : i32, i32
  }
  func.func @transform_13(%arg0: i32) -> (i32, i32) {
    %c0_i32 = arith.constant 0 : i32
    %c0_i32_0 = arith.constant 0 : i32
    %c0_i32_1 = arith.constant 0 : i32
    return %c0_i32, %c0_i32_0 : i32, i32
  }
  func.func @transform_14(%arg0: i32) -> (i32, i32) {
    %c0_i32 = arith.constant 0 : i32
    %c0_i32_0 = arith.constant 0 : i32
    %c0_i32_1 = arith.constant 0 : i32
    return %c0_i32, %c0_i32_0 : i32, i32
  }
  func.func @transform_15(%arg0: i32) -> (i32, i32, i32) {
    %c0_i32 = arith.constant 0 : i32
    %c0_i32_0 = arith.constant 0 : i32
    %c0_i32_1 = arith.constant 0 : i32
    %c0_i32_2 = arith.constant 0 : i32
    return %c0_i32, %c0_i32_0, %c0_i32_1 : i32, i32, i32
  }
  func.func @transform_16(%arg0: i32) -> (i32, i32) {
    %c0_i32 = arith.constant 0 : i32
    %c0_i32_0 = arith.constant 0 : i32
    %c0_i32_1 = arith.constant 0 : i32
    return %c0_i32, %c0_i32_0 : i32, i32
  }
  func.func @transform_17(%arg0: i32) -> (i32, i32) {
    %c0_i32 = arith.constant 0 : i32
    %c0_i32_0 = arith.constant 0 : i32
    %c0_i32_1 = arith.constant 0 : i32
    return %c0_i32, %c0_i32_0 : i32, i32
  }
  func.func @transform_18(%arg0: i32) -> (i32, i32) {
    %c0_i32 = arith.constant 0 : i32
    %c0_i32_0 = arith.constant 0 : i32
    %c0_i32_1 = arith.constant 0 : i32
    return %c0_i32, %c0_i32_0 : i32, i32
  }
  func.func @transform_19(%arg0: i32) -> (i32, i32) {
    %c0_i32 = arith.constant 0 : i32
    %c0_i32_0 = arith.constant 0 : i32
    return %arg0, %c0_i32 : i32, i32
  }
}

</mosaic_0001>

<llo_original>
// kernel: tpu_custom_call.1
$region0: #{tpu_custom_call.1}
  #allocation0 [shape = 'u32[]', space=smem, size = 0x4, offset = 0x4, fixed_abs, tag = 'smem constant byte address 0x4 - core index']
  #allocation1 [shape = 'u32[144,128]{1,0:T(1,128)}', space=vmem, size = 0x12000, scoped, tag = 'internal scratch']
  %s0 = inlined_call_operand.vmem [shape: f32[32,64], index: 0, kind: input, shape index: {}]
  %s1 = inlined_call_operand.vmem [shape: f32[2,32], index: 1, kind: input, shape index: {}]
  %s2 = inlined_call_operand.vmem [shape: f32[32,2], index: 2, kind: input, shape index: {}]
  %s3 = inlined_call_operand.vmem [shape: f32[32,1], index: 3, kind: input, shape index: {}]
  %s4 = inlined_call_operand.vmem [shape: f32[32,1], index: 4, kind: input, shape index: {}]
  %s5 = inlined_call_operand.vmem [shape: f32[1,64], index: 5, kind: input, shape index: {}]
  %s6 = inlined_call_operand.vmem [shape: f32[1,64], index: 6, kind: input, shape index: {}]
  %s7 = inlined_call_operand.vmem [shape: f32[64,4], index: 7, kind: input, shape index: {}]
  %s8 = inlined_call_operand.vmem [shape: f32[4,64], index: 8, kind: input, shape index: {}]
  %s9 = inlined_call_operand.vmem [shape: f32[3,64,128], index: 9, kind: input, shape index: {}]
  %s10 = inlined_call_operand.vmem [shape: f32[1,128], index: 10, kind: input, shape index: {}]
  %s11 = inlined_call_operand.vmem [shape: f32[1,128], index: 11, kind: input, shape index: {}]
  %s12 = inlined_call_operand.vmem [shape: f32[1,128], index: 12, kind: input, shape index: {}]
  %s13 = inlined_call_operand.vmem [shape: f32[128,8], index: 13, kind: input, shape index: {}]
  %s14 = inlined_call_operand.vmem [shape: f32[8,128], index: 14, kind: input, shape index: {}]
  %s15 = inlined_call_operand.hbm [shape: f32[3,128,128], index: 15, kind: input, shape index: {}]
  %s16 = inlined_call_operand.vmem [shape: f32[1,128], index: 16, kind: input, shape index: {}]
  %s17 = inlined_call_operand.vmem [shape: f32[64,128], index: 17, kind: input, shape index: {}]
  %s18 = inlined_call_operand.vmem [shape: f32[1,128], index: 18, kind: input, shape index: {}]
  %s19 = inlined_call_operand.hbm [shape: f32[32,128], index: 19, kind: output, shape index: {}]
  %s20 = sld [smem:[#allocation0]]
  $region90: #{tpu_custom_call.1} parent=0
    _
  %s22 = ssub.s32 1, %s20
  %s23 = scalar_select 0, %s22, %s20
  $region1: #{tpu_custom_call.1} parent=0
    #allocation2 [shape = 'u8[196608]{0}', space=vmem, size = 0x30000, scoped, tag = 'input window, operand 15, single buffered']
    #allocation3 [shape = 's32[1]{0}', space=sflag, size = 0x4, scoped, tag = 'scoped memory for tpu_custom_call.1']
    #allocation4 [shape = 's32[1]{0}', space=sflag, size = 0x4, scoped, tag = 'scoped memory for tpu_custom_call.1']
    #allocation5 [shape = 'u8[16384]{0}', space=vmem, size = 0x4000, scoped, tag = 'output window, operand 0, single buffered']
    %24 = vsyncpa [#allocation3], 0
    %25 = vsyncpa [#allocation4], 0
    // Predicated region
    $region2: #{tpu_custom_call.1} parent=1 // pred_check
      _
    $region3: #{tpu_custom_call.1} parent=1 // pred_check_branch
      %27 = sbr.rel (0) target = $region5
    $region4: #{tpu_custom_call.1} parent=1 // pred_region
      _
    $region5: #{tpu_custom_call.1} parent=1 // pred_fallthru
      _
    // Predicated region
    $region6: #{tpu_custom_call.1} parent=1 // pred_check
      _
    $region7: #{tpu_custom_call.1} parent=1 // pred_check_branch
      %29 = sbr.rel (0) target = $region9
    $region8: #{tpu_custom_call.1} parent=1 // pred_region
      _
    $region9: #{tpu_custom_call.1} parent=1 // pred_fallthru
      _
    // Predicated region
    $region10: #{tpu_custom_call.1} parent=1 // pred_check
      _
    $region11: #{tpu_custom_call.1} parent=1 // pred_check_branch
      %31 = sbr.rel (0) target = $region13
    $region12: #{tpu_custom_call.1} parent=1 // pred_region
      _
    $region13: #{tpu_custom_call.1} parent=1 // pred_fallthru
      _
    // Predicated region
    $region14: #{tpu_custom_call.1} parent=1 // pred_check
      _
    $region15: #{tpu_custom_call.1} parent=1 // pred_check_branch
      %33 = sbr.rel (0) target = $region17
    $region16: #{tpu_custom_call.1} parent=1 // pred_region
      _
    $region17: #{tpu_custom_call.1} parent=1 // pred_fallthru
      _
    // Predicated region
    $region18: #{tpu_custom_call.1} parent=1 // pred_check
      _
    $region19: #{tpu_custom_call.1} parent=1 // pred_check_branch
      %35 = sbr.rel (0) target = $region21
    $region20: #{tpu_custom_call.1} parent=1 // pred_region
      _
    $region21: #{tpu_custom_call.1} parent=1 // pred_fallthru
      _
    // Predicated region
    $region22: #{tpu_custom_call.1} parent=1 // pred_check
      _
    $region23: #{tpu_custom_call.1} parent=1 // pred_check_branch
      %37 = sbr.rel (0) target = $region25
    $region24: #{tpu_custom_call.1} parent=1 // pred_region
      _
    $region25: #{tpu_custom_call.1} parent=1 // pred_fallthru
      _
    // Predicated region
    $region26: #{tpu_custom_call.1} parent=1 // pred_check
      _
    $region27: #{tpu_custom_call.1} parent=1 // pred_check_branch
      %39 = sbr.rel (0) target = $region29
    $region28: #{tpu_custom_call.1} parent=1 // pred_region
      _
    $region29: #{tpu_custom_call.1} parent=1 // pred_fallthru
      _
    // Predicated region
    $region30: #{tpu_custom_call.1} parent=1 // pred_check
      _
    $region31: #{tpu_custom_call.1} parent=1 // pred_check_branch
      %41 = sbr.rel (0) target = $region33
    $region32: #{tpu_custom_call.1} parent=1 // pred_region
      _
    $region33: #{tpu_custom_call.1} parent=1 // pred_fallthru
      _
    // Predicated region
    $region34: #{tpu_custom_call.1} parent=1 // pred_check
      _
    $region35: #{tpu_custom_call.1} parent=1 // pred_check_branch
      %43 = sbr.rel (0) target = $region37
    $region36: #{tpu_custom_call.1} parent=1 // pred_region
      _
    $region37: #{tpu_custom_call.1} parent=1 // pred_fallthru
      _
    // Predicated region
    $region38: #{tpu_custom_call.1} parent=1 // pred_check
      _
    $region39: #{tpu_custom_call.1} parent=1 // pred_check_branch
      %45 = sbr.rel (0) target = $region41
    $region40: #{tpu_custom_call.1} parent=1 // pred_region
      _
    $region41: #{tpu_custom_call.1} parent=1 // pred_fallthru
      _
    // Predicated region
    $region42: #{tpu_custom_call.1} parent=1 // pred_check
      _
    $region43: #{tpu_custom_call.1} parent=1 // pred_check_branch
      %47 = sbr.rel (0) target = $region45
    $region44: #{tpu_custom_call.1} parent=1 // pred_region
      _
    $region45: #{tpu_custom_call.1} parent=1 // pred_fallthru
      _
    // Predicated region
    $region46: #{tpu_custom_call.1} parent=1 // pred_check
      _
    $region47: #{tpu_custom_call.1} parent=1 // pred_check_branch
      %49 = sbr.rel (0) target = $region49
    $region48: #{tpu_custom_call.1} parent=1 // pred_region
      _
    $region49: #{tpu_custom_call.1} parent=1 // pred_fallthru
      _
    // Predicated region
    $region50: #{tpu_custom_call.1} parent=1 // pred_check
      _
    $region51: #{tpu_custom_call.1} parent=1 // pred_check_branch
      %51 = sbr.rel (0) target = $region53
    $region52: #{tpu_custom_call.1} parent=1 // pred_region
      _
    $region53: #{tpu_custom_call.1} parent=1 // pred_fallthru
      _
    // Predicated region
    $region54: #{tpu_custom_call.1} parent=1 // pred_check
      _
    $region55: #{tpu_custom_call.1} parent=1 // pred_check_branch
      %53 = sbr.rel (0) target = $region57
    $region56: #{tpu_custom_call.1} parent=1 // pred_region
      _
    $region57: #{tpu_custom_call.1} parent=1 // pred_fallthru
      _
    // Predicated region
    $region58: #{tpu_custom_call.1} parent=1 // pred_check
      _
    $region59: #{tpu_custom_call.1} parent=1 // pred_check_branch
      %55 = sbr.rel (0) target = $region61
    $region60: #{tpu_custom_call.1} parent=1 // pred_region
      _
    $region61: #{tpu_custom_call.1} parent=1 // pred_fallthru
      _
    // Predicated region
    $region62: #{tpu_custom_call.1} parent=1 // pred_check
      _
    $region63: #{tpu_custom_call.1} parent=1 // pred_check_branch
      %57 = sbr.rel (0) target = $region65
    $region64: #{tpu_custom_call.1} parent=1 // pred_region
      %s59 = ssub.s32 6144, 6144
      %60 = vsyncadd [#allocation3], %s59
      %s61 = sshll.u32 [#allocation2], 4
      %s62 = int_to_ptr.vmem [resolvable:$true] %s61
      %67 = dma.hbm_to_vmem [thread:$0]  %s15, 6144, %s62, [#allocation3], 128, 128, 8
    $region65: #{tpu_custom_call.1} parent=1 // pred_fallthru
      _
    // Predicated region
    $region66: #{tpu_custom_call.1} parent=1 // pred_check
      _
    $region67: #{tpu_custom_call.1} parent=1 // pred_check_branch
      %69 = sbr.rel (0) target = $region69
    $region68: #{tpu_custom_call.1} parent=1 // pred_region
      _
    $region69: #{tpu_custom_call.1} parent=1 // pred_fallthru
      _
    // Predicated region
    $region70: #{tpu_custom_call.1} parent=1 // pred_check
      _
    $region71: #{tpu_custom_call.1} parent=1 // pred_check_branch
      %71 = sbr.rel (0) target = $region73
    $region72: #{tpu_custom_call.1} parent=1 // pred_region
      _
    $region73: #{tpu_custom_call.1} parent=1 // pred_fallthru
      _
    // Predicated region
    $region74: #{tpu_custom_call.1} parent=1 // pred_check
      _
    $region75: #{tpu_custom_call.1} parent=1 // pred_check_branch
      %73 = sbr.rel (0) target = $region77
    $region76: #{tpu_custom_call.1} parent=1 // pred_region
      _
    $region77: #{tpu_custom_call.1} parent=1 // pred_fallthru
      _
    // Predicated region
    $region78: #{tpu_custom_call.1} parent=1 // pred_check
      _
    $region79: #{tpu_custom_call.1} parent=1 // pred_check_branch
      %75 = sbr.rel (0) target = $region81
    $region80: #{tpu_custom_call.1} parent=1 // pred_region
      %76 = dma.done [#allocation3], 6144
    $region81: #{tpu_custom_call.1} parent=1 // pred_fallthru
      _
    %v77 = vld [vmem:[%s0] sm:$0xff]
    %v78 = vld [vmem:[%s0 + $0x8] sm:$0xff]
    %v79 = vld [vmem:[%s0 + $0x10] sm:$0xff]
    %v80 = vld [vmem:[%s0 + $0x18] sm:$0xff]
    %v81 = vld [vmem:[%s1] sm:$0x3]
    %v82 = vld [vmem:[%s2] sm:$0xff]
    %v83 = vld [vmem:[%s2 + $0x8] sm:$0xff]
    %v84 = vld [vmem:[%s2 + $0x10] sm:$0xff]
    %v85 = vld [vmem:[%s2 + $0x18] sm:$0xff]
    %v86 = vld [vmem:[%s3] sm:$0xff]
    %v87 = vld [vmem:[%s3 + $0x8] sm:$0xff]
    %v88 = vld [vmem:[%s3 + $0x10] sm:$0xff]
    %v89 = vld [vmem:[%s3 + $0x18] sm:$0xff]
    %v90 = vld [vmem:[%s4] sm:$0xff]
    %v91 = vld [vmem:[%s4 + $0x8] sm:$0xff]
    %v92 = vld [vmem:[%s4 + $0x10] sm:$0xff]
    %v93 = vld [vmem:[%s4 + $0x18] sm:$0xff]
    %v94 = vld [vmem:[%s17] sm:$0xff]
    %v95 = vld [vmem:[%s17 + $0x8] sm:$0xff]
    %v96 = vld [vmem:[%s17 + $0x10] sm:$0xff]
    %v97 = vld [vmem:[%s17 + $0x18] sm:$0xff]
    %v98 = vld [vmem:[%s17 + $0x20] sm:$0xff]
    %v99 = vld [vmem:[%s17 + $0x28] sm:$0xff]
    %v100 = vld [vmem:[%s17 + $0x30] sm:$0xff]
    %v101 = vld [vmem:[%s17 + $0x38] sm:$0xff]
    %v102 = vld [vmem:[%s18] sm:$0x1]
    %v104 = vlaneseq
    %v105 = vshrl.u32 %v104, 7
    %v106 = vsub.s32 0, %v105
    %v107 = vrot.slane %v102, %v106
    %vm109 = vcmask 523264
    %v111 = vsel %vm109, %v77, 0
    %v114 = vsel %vm109, %v78, 0
    %v117 = vsel %vm109, %v79, 0
    %v120 = vsel %vm109, %v80, 0
    %122 = vmatprep.subr.mxu0 0.0
    %123 = vmatpush1.msra.mxu0 %v94
    %124 = vmatprep.subr.mxu0 0.0
    %125 = vmatpush1.msra.mxu0 %v95
    %126 = vmatprep.subr.mxu0 0.0
    %127 = vmatpush1.msra.mxu0 %v96
    %128 = vmatprep.subr.mxu0 0.0
    %129 = vmatpush1.msra.mxu0 %v97
    %130 = vmatprep.subr.mxu0 0.0
    %131 = vmatpush1.msra.mxu0 %v98
    %132 = vmatprep.subr.mxu0 0.0
    %133 = vmatpush1.msra.mxu0 %v99
    %134 = vmatprep.subr.mxu0 0.0
    %135 = vmatpush1.msra.mxu0 %v100
    %136 = vmatprep.subr.mxu0 0.0
    %137 = vmatpush1.msra.mxu0 %v101
    %138 = vmatprep.subr.mxu0 0.0
    %139 = vmatpush1.msra.mxu0 0.0
    %140 = vmatprep.subr.mxu0 0.0
    %141 = vmatpush1.msra.mxu0 0.0
    %142 = vmatprep.subr.mxu0 0.0
    %143 = vmatpush1.msra.mxu0 0.0
    %144 = vmatprep.subr.mxu0 0.0
    %145 = vmatpush1.msra.mxu0 0.0
    %146 = vmatprep.subr.mxu0 0.0
    %147 = vmatpush1.msra.mxu0 0.0
    %148 = vmatprep.subr.mxu0 0.0
    %149 = vmatpush1.msra.mxu0 0.0
    %150 = vmatprep.subr.mxu0 0.0
    %151 = vmatpush1.msra.mxu0 0.0
    %152 = vmatprep.subr.mxu0 0.0
    %153 = vmatpush1.msra.mxu0 0.0
    %154 = vmatprep.subr.mxu0 0.0
    %155 = vmatpush1.msra.mxu0 0.0
    %156 = vmatprep.subr.mxu0 0.0
    %157 = vmatpush1.msra.mxu0 0.0
    %158 = vmatprep.subr.mxu0 0.0
    %159 = vmatpush1.msra.mxu0 0.0
    %160 = vmatprep.subr.mxu0 0.0
    %161 = vmatpush1.msra.mxu0 0.0
    %162 = vmatprep.subr.mxu0 0.0
    %163 = vmatpush1.msra.mxu0 0.0
    %164 = vmatprep.subr.mxu0 0.0
    %165 = vmatpush1.msra.mxu0 0.0
    %166 = vmatprep.subr.mxu0 0.0
    %167 = vmatpush1.msra.mxu0 0.0
    %168 = vmatprep.subr.mxu0 0.0
    %169 = vmatpush1.msra.mxu0 0.0
    %170 = vmatprep.subr.mxu0 0.0
    %171 = vmatpush1.msra.mxu0 0.0
    %172 = vmatprep.subr.mxu0 0.0
    %173 = vmatpush1.msra.mxu0 0.0
    %174 = vmatprep.subr.mxu0 0.0
    %175 = vmatpush1.msra.mxu0 0.0
    %176 = vmatprep.subr.mxu0 0.0
    %177 = vmatpush1.msra.mxu0 0.0
    %178 = vmatprep.subr.mxu0 0.0
    %179 = vmatpush1.msra.mxu0 0.0
    %180 = vmatprep.subr.mxu0 0.0
    %181 = vmatpush1.msra.mxu0 0.0
    %182 = vmatprep.subr.mxu0 0.0
    %183 = vmatpush1.msra.mxu0 0.0
    %184 = vmatprep.subr.mxu0 0.0
    %185 = vmatpush1.msra.mxu0 0.0
    %186 = vmatprep.mubr.f32.mxu0 0.0
    %187 = vmatmul.mubr.f32.gmra.mrb[0].mxu0 %v111
    %v188 = vpop.f32.mrb[0].mxu0
    %v189 = vadd.f32 %v107, %v188
    %v190 = vpop.f32.mrb[0].mxu0
    %191 = vmatprep.mubr.f32.mxu0 0.0
    %192 = vmatmul.mubr.f32.gmra.mrb[0].mxu0 %v114
    %v193 = vpop.f32.mrb[0].mxu0
    %v194 = vadd.f32 %v107, %v193
    %v195 = vpop.f32.mrb[0].mxu0
    %196 = vmatprep.mubr.f32.mxu0 0.0
    %197 = vmatmul.mubr.f32.gmra.mrb[0].mxu0 %v117
    %v198 = vpop.f32.mrb[0].mxu0
    %v199 = vadd.f32 %v107, %v198
    %v200 = vpop.f32.mrb[0].mxu0
    %201 = vmatprep.mubr.f32.mxu0 0.0
    %202 = vmatmul.mubr.f32.gmra.mrb[0].mxu0 %v120
    %v203 = vpop.f32.mrb[0].mxu0
    %v204 = vadd.f32 %v107, %v203
    %v205 = vpop.f32.mrb[0].mxu0
    %206 = vdwg.mxu0
    %vm207 = vcmask 261120
    %v209 = vsel %vm207, %v81, 0
    %211 = vmatprep.subr.mxu0 0.0
    %212 = vmatpush1.msra.mxu0 %v77
    %213 = vmatprep.subr.mxu0 0.0
    %214 = vmatpush1.msra.mxu0 %v78
    %215 = vmatprep.subr.mxu0 0.0
    %216 = vmatpush1.msra.mxu0 %v79
    %217 = vmatprep.subr.mxu0 0.0
    %218 = vmatpush1.msra.mxu0 %v80
    %219 = vmatprep.subr.mxu0 0.0
    %220 = vmatpush1.msra.mxu0 0.0
    %221 = vmatprep.subr.mxu0 0.0
    %222 = vmatpush1.msra.mxu0 0.0
    %223 = vmatprep.subr.mxu0 0.0
    %224 = vmatpush1.msra.mxu0 0.0
    %225 = vmatprep.subr.mxu0 0.0
    %226 = vmatpush1.msra.mxu0 0.0
    %227 = vmatprep.subr.mxu0 0.0
    %228 = vmatpush1.msra.mxu0 0.0
    %229 = vmatprep.subr.mxu0 0.0
    %230 = vmatpush1.msra.mxu0 0.0
    %231 = vmatprep.subr.mxu0 0.0
    %232 = vmatpush1.msra.mxu0 0.0
    %233 = vmatprep.subr.mxu0 0.0
    %234 = vmatpush1.msra.mxu0 0.0
    %235 = vmatprep.subr.mxu0 0.0
    %236 = vmatpush1.msra.mxu0 0.0
    %237 = vmatprep.subr.mxu0 0.0
    %238 = vmatpush1.msra.mxu0 0.0
    %239 = vmatprep.subr.mxu0 0.0
    %240 = vmatpush1.msra.mxu0 0.0
    %241 = vmatprep.subr.mxu0 0.0
    %242 = vmatpush1.msra.mxu0 0.0
    %243 = vmatprep.subr.mxu0 0.0
    %244 = vmatpush1.msra.mxu0 0.0
    %245 = vmatprep.subr.mxu0 0.0
    %246 = vmatpush1.msra.mxu0 0.0
    %247 = vmatprep.subr.mxu0 0.0
    %248 = vmatpush1.msra.mxu0 0.0
    %249 = vmatprep.subr.mxu0 0.0
    %250 = vmatpush1.msra.mxu0 0.0
    %251 = vmatprep.subr.mxu0 0.0
    %252 = vmatpush1.msra.mxu0 0.0
    %253 = vmatprep.subr.mxu0 0.0
    %254 = vmatpush1.msra.mxu0 0.0
    %255 = vmatprep.subr.mxu0 0.0
    %256 = vmatpush1.msra.mxu0 0.0
    %257 = vmatprep.subr.mxu0 0.0
    %258 = vmatpush1.msra.mxu0 0.0
    %259 = vmatprep.subr.mxu0 0.0
    %260 = vmatpush1.msra.mxu0 0.0
    %261 = vmatprep.subr.mxu0 0.0
    %262 = vmatpush1.msra.mxu0 0.0
    %263 = vmatprep.subr.mxu0 0.0
    %264 = vmatpush1.msra.mxu0 0.0
    %265 = vmatprep.subr.mxu0 0.0
    %266 = vmatpush1.msra.mxu0 0.0
    %267 = vmatprep.subr.mxu0 0.0
    %268 = vmatpush1.msra.mxu0 0.0
    %269 = vmatprep.subr.mxu0 0.0
    %270 = vmatpush1.msra.mxu0 0.0
    %271 = vmatprep.subr.mxu0 0.0
    %272 = vmatpush1.msra.mxu0 0.0
    %273 = vmatprep.subr.mxu0 0.0
    %274 = vmatpush1.msra.mxu0 0.0
    %275 = vmatprep.mubr.f32.mxu0 0.0
    %276 = vmatmul.mubr.f32.gmra.mrb[0].mxu0 %v209
    %v277 = vpop.f32.mrb[0].mxu0
    %v278 = vadd.f32 0.0, %v277
    %v279 = vpop.f32.mrb[0].mxu0
    %280 = vdwg.mxu0
    %v281 = vld [vmem:[%s7] sm:$0xff]
    %v282 = vld [vmem:[%s7 + $0x8] sm:$0xff]
    %v283 = vld [vmem:[%s7 + $0x10] sm:$0xff]
    %v284 = vld [vmem:[%s7 + $0x18] sm:$0xff]
    %v285 = vld [vmem:[%s7 + $0x20] sm:$0xff]
    %v286 = vld [vmem:[%s7 + $0x28] sm:$0xff]
    %v287 = vld [vmem:[%s7 + $0x30] sm:$0xff]
    %v288 = vld [vmem:[%s7 + $0x38] sm:$0xff]
    %v290 = vsel %vm109, %v278, 0
    %292 = vmatprep.subr.mxu0 0.0
    %293 = vmatpush1.msra.mxu0 %v281
    %294 = vmatprep.subr.mxu0 0.0
    %295 = vmatpush1.msra.mxu0 %v282
    %296 = vmatprep.subr.mxu0 0.0
    %297 = vmatpush1.msra.mxu0 %v283
    %298 = vmatprep.subr.mxu0 0.0
    %299 = vmatpush1.msra.mxu0 %v284
    %300 = vmatprep.subr.mxu0 0.0
    %301 = vmatpush1.msra.mxu0 %v285
    %302 = vmatprep.subr.mxu0 0.0
    %303 = vmatpush1.msra.mxu0 %v286
    %304 = vmatprep.subr.mxu0 0.0
    %305 = vmatpush1.msra.mxu0 %v287
    %306 = vmatprep.subr.mxu0 0.0
    %307 = vmatpush1.msra.mxu0 %v288
    %308 = vmatprep.subr.mxu0 0.0
    %309 = vmatpush1.msra.mxu0 0.0
    %310 = vmatprep.subr.mxu0 0.0
    %311 = vmatpush1.msra.mxu0 0.0
    %312 = vmatprep.subr.mxu0 0.0
    %313 = vmatpush1.msra.mxu0 0.0
    %314 = vmatprep.subr.mxu0 0.0
    %315 = vmatpush1.msra.mxu0 0.0
    %316 = vmatprep.subr.mxu0 0.0
    %317 = vmatpush1.msra.mxu0 0.0
    %318 = vmatprep.subr.mxu0 0.0
    %319 = vmatpush1.msra.mxu0 0.0
    %320 = vmatprep.subr.mxu0 0.0
    %321 = vmatpush1.msra.mxu0 0.0
    %322 = vmatprep.subr.mxu0 0.0
    %323 = vmatpush1.msra.mxu0 0.0
    %324 = vmatprep.subr.mxu0 0.0
    %325 = vmatpush1.msra.mxu0 0.0
    %326 = vmatprep.subr.mxu0 0.0
    %327 = vmatpush1.msra.mxu0 0.0
    %328 = vmatprep.subr.mxu0 0.0
    %329 = vmatpush1.msra.mxu0 0.0
    %330 = vmatprep.subr.mxu0 0.0
    %331 = vmatpush1.msra.mxu0 0.0
    %332 = vmatprep.subr.mxu0 0.0
    %333 = vmatpush1.msra.mxu0 0.0
    %334 = vmatprep.subr.mxu0 0.0
    %335 = vmatpush1.msra.mxu0 0.0
    %336 = vmatprep.subr.mxu0 0.0
    %337 = vmatpush1.msra.mxu0 0.0
    %338 = vmatprep.subr.mxu0 0.0
    %339 = vmatpush1.msra.mxu0 0.0
    %340 = vmatprep.subr.mxu0 0.0
    %341 = vmatpush1.msra.mxu0 0.0
    %342 = vmatprep.subr.mxu0 0.0
    %343 = vmatpush1.msra.mxu0 0.0
    %344 = vmatprep.subr.mxu0 0.0
    %345 = vmatpush1.msra.mxu0 0.0
    %346 = vmatprep.subr.mxu0 0.0
    %347 = vmatpush1.msra.mxu0 0.0
    %348 = vmatprep.subr.mxu0 0.0
    %349 = vmatpush1.msra.mxu0 0.0
    %350 = vmatprep.subr.mxu0 0.0
    %351 = vmatpush1.msra.mxu0 0.0
    %352 = vmatprep.subr.mxu0 0.0
    %353 = vmatpush1.msra.mxu0 0.0
    %354 = vmatprep.subr.mxu0 0.0
    %355 = vmatpush1.msra.mxu0 0.0
    %356 = vmatprep.mubr.f32.mxu0 0.0
    %357 = vmatmul.mubr.f32.gmra.mrb[0].mxu0 %v290
    %v358 = vpop.f32.mrb[0].mxu0
    %v359 = vadd.f32 0.0, %v358
    %v360 = vpop.f32.mrb[0].mxu0
    %361 = vdwg.mxu0
    %v362 = vld [vmem:[%s8] sm:$0xf]
    %vm363 = vcmask 31744
    %v365 = vsel %vm363, %v359, 0
    %vm367 = vcmask 1043456
    %v369 = vsel %vm367, %v362, 0
    %371 = vmatprep.subr.mxu0 0.0
    %372 = vmatpush1.msra.mxu0 %v369
    %373 = vmatprep.subr.mxu0 0.0
    %374 = vmatpush1.msra.mxu0 0.0
    %375 = vmatprep.subr.mxu0 0.0
    %376 = vmatpush1.msra.mxu0 0.0
    %377 = vmatprep.subr.mxu0 0.0
    %378 = vmatpush1.msra.mxu0 0.0
    %379 = vmatprep.subr.mxu0 0.0
    %380 = vmatpush1.msra.mxu0 0.0
    %381 = vmatprep.subr.mxu0 0.0
    %382 = vmatpush1.msra.mxu0 0.0
    %383 = vmatprep.subr.mxu0 0.0
    %384 = vmatpush1.msra.mxu0 0.0
    %385 = vmatprep.subr.mxu0 0.0
    %386 = vmatpush1.msra.mxu0 0.0
    %387 = vmatprep.subr.mxu0 0.0
    %388 = vmatpush1.msra.mxu0 0.0
    %389 = vmatprep.subr.mxu0 0.0
    %390 = vmatpush1.msra.mxu0 0.0
    %391 = vmatprep.subr.mxu0 0.0
    %392 = vmatpush1.msra.mxu0 0.0
    %393 = vmatprep.subr.mxu0 0.0
    %394 = vmatpush1.msra.mxu0 0.0
    %395 = vmatprep.subr.mxu0 0.0
    %396 = vmatpush1.msra.mxu0 0.0
    %397 = vmatprep.subr.mxu0 0.0
    %398 = vmatpush1.msra.mxu0 0.0
    %399 = vmatprep.subr.mxu0 0.0
    %400 = vmatpush1.msra.mxu0 0.0
    %401 = vmatprep.subr.mxu0 0.0
    %402 = vmatpush1.msra.mxu0 0.0
    %403 = vmatprep.subr.mxu0 0.0
    %404 = vmatpush1.msra.mxu0 0.0
    %405 = vmatprep.subr.mxu0 0.0
    %406 = vmatpush1.msra.mxu0 0.0
    %407 = vmatprep.subr.mxu0 0.0
    %408 = vmatpush1.msra.mxu0 0.0
    %409 = vmatprep.subr.mxu0 0.0
    %410 = vmatpush1.msra.mxu0 0.0
    %411 = vmatprep.subr.mxu0 0.0
    %412 = vmatpush1.msra.mxu0 0.0
    %413 = vmatprep.subr.mxu0 0.0
    %414 = vmatpush1.msra.mxu0 0.0
    %415 = vmatprep.subr.mxu0 0.0
    %416 = vmatpush1.msra.mxu0 0.0
    %417 = vmatprep.subr.mxu0 0.0
    %418 = vmatpush1.msra.mxu0 0.0
    %419 = vmatprep.subr.mxu0 0.0
    %420 = vmatpush1.msra.mxu0 0.0
    %421 = vmatprep.subr.mxu0 0.0
    %422 = vmatpush1.msra.mxu0 0.0
    %423 = vmatprep.subr.mxu0 0.0
    %424 = vmatpush1.msra.mxu0 0.0
    %425 = vmatprep.subr.mxu0 0.0
    %426 = vmatpush1.msra.mxu0 0.0
    %427 = vmatprep.subr.mxu0 0.0
    %428 = vmatpush1.msra.mxu0 0.0
    %429 = vmatprep.subr.mxu0 0.0
    %430 = vmatpush1.msra.mxu0 0.0
    %431 = vmatprep.subr.mxu0 0.0
    %432 = vmatpush1.msra.mxu0 0.0
    %433 = vmatprep.subr.mxu0 0.0
    %434 = vmatpush1.msra.mxu0 0.0
    %435 = vmatprep.mubr.f32.mxu0 0.0
    %436 = vmatmul.mubr.f32.gmra.mrb[0].mxu0 %v365
    %v437 = vpop.f32.mrb[0].mxu0
    %v438 = vadd.f32 0.0, %v437
    %v439 = vpop.f32.mrb[0].mxu0
    %440 = vdwg.mxu0
    %vm441 = vcmask 15360
    %v443 = vsel %vm441, %v82, 0
    %v446 = vsel %vm441, %v83, 0
    %v449 = vsel %vm441, %v84, 0
    %v452 = vsel %vm441, %v85, 0
    %vm454 = vcmask 1041408
    %v456 = vsel %vm454, %v438, 0
    %458 = vmatprep.subr.mxu0 0.0
    %459 = vmatpush1.msra.mxu0 %v456
    %460 = vmatprep.subr.mxu0 0.0
    %461 = vmatpush1.msra.mxu0 0.0
    %462 = vmatprep.subr.mxu0 0.0
    %463 = vmatpush1.msra.mxu0 0.0
    %464 = vmatprep.subr.mxu0 0.0
    %465 = vmatpush1.msra.mxu0 0.0
    %466 = vmatprep.subr.mxu0 0.0
    %467 = vmatpush1.msra.mxu0 0.0
    %468 = vmatprep.subr.mxu0 0.0
    %469 = vmatpush1.msra.mxu0 0.0
    %470 = vmatprep.subr.mxu0 0.0
    %471 = vmatpush1.msra.mxu0 0.0
    %472 = vmatprep.subr.mxu0 0.0
    %473 = vmatpush1.msra.mxu0 0.0
    %474 = vmatprep.subr.mxu0 0.0
    %475 = vmatpush1.msra.mxu0 0.0
    %476 = vmatprep.subr.mxu0 0.0
    %477 = vmatpush1.msra.mxu0 0.0
    %478 = vmatprep.subr.mxu0 0.0
    %479 = vmatpush1.msra.mxu0 0.0
    %480 = vmatprep.subr.mxu0 0.0
    %481 = vmatpush1.msra.mxu0 0.0
    %482 = vmatprep.subr.mxu0 0.0
    %483 = vmatpush1.msra.mxu0 0.0
    %484 = vmatprep.subr.mxu0 0.0
    %485 = vmatpush1.msra.mxu0 0.0
    %486 = vmatprep.subr.mxu0 0.0
    %487 = vmatpush1.msra.mxu0 0.0
    %488 = vmatprep.subr.mxu0 0.0
    %489 = vmatpush1.msra.mxu0 0.0
    %490 = vmatprep.subr.mxu0 0.0
    %491 = vmatpush1.msra.mxu0 0.0
    %492 = vmatprep.subr.mxu0 0.0
    %493 = vmatpush1.msra.mxu0 0.0
    %494 = vmatprep.subr.mxu0 0.0
    %495 = vmatpush1.msra.mxu0 0.0
    %496 = vmatprep.subr.mxu0 0.0
    %497 = vmatpush1.msra.mxu0 0.0
    %498 = vmatprep.subr.mxu0 0.0
    %499 = vmatpush1.msra.mxu0 0.0
    %500 = vmatprep.subr.mxu0 0.0
    %501 = vmatpush1.msra.mxu0 0.0
    %502 = vmatprep.subr.mxu0 0.0
    %503 = vmatpush1.msra.mxu0 0.0
    %504 = vmatprep.subr.mxu0 0.0
    %505 = vmatpush1.msra.mxu0 0.0
    %506 = vmatprep.subr.mxu0 0.0
    %507 = vmatpush1.msra.mxu0 0.0
    %508 = vmatprep.subr.mxu0 0.0
    %509 = vmatpush1.msra.mxu0 0.0
    %510 = vmatprep.subr.mxu0 0.0
    %511 = vmatpush1.msra.mxu0 0.0
    %512 = vmatprep.subr.mxu0 0.0
    %513 = vmatpush1.msra.mxu0 0.0
    %514 = vmatprep.subr.mxu0 0.0
    %515 = vmatpush1.msra.mxu0 0.0
    %516 = vmatprep.subr.mxu0 0.0
    %517 = vmatpush1.msra.mxu0 0.0
    %518 = vmatprep.subr.mxu0 0.0
    %519 = vmatpush1.msra.mxu0 0.0
    %520 = vmatprep.subr.mxu0 0.0
    %521 = vmatpush1.msra.mxu0 0.0
    %522 = vmatprep.mubr.f32.mxu0 0.0
    %523 = vmatmul.mubr.f32.gmra.mrb[0].mxu0 %v443
    %v524 = vpop.f32.mrb[0].mxu0
    %v525 = vadd.f32 0.0, %v524
    %v526 = vpop.f32.mrb[0].mxu0
    %527 = vmatprep.mubr.f32.mxu0 0.0
    %528 = vmatmul.mubr.f32.gmra.mrb[0].mxu0 %v446
    %v529 = vpop.f32.mrb[0].mxu0
    %v530 = vadd.f32 0.0, %v529
    %v531 = vpop.f32.mrb[0].mxu0
    %532 = vmatprep.mubr.f32.mxu0 0.0
    %533 = vmatmul.mubr.f32.gmra.mrb[0].mxu0 %v449
    %v534 = vpop.f32.mrb[0].mxu0
    %v535 = vadd.f32 0.0, %v534
    %v536 = vpop.f32.mrb[0].mxu0
    %537 = vmatprep.mubr.f32.mxu0 0.0
    %538 = vmatmul.mubr.f32.gmra.mrb[0].mxu0 %v452
    %v539 = vpop.f32.mrb[0].mxu0
    %v540 = vadd.f32 0.0, %v539
    %v541 = vpop.f32.mrb[0].mxu0
    %542 = vdwg.mxu0
    %v543 = vsub.f32 %v77, %v525
    %v544 = vsub.f32 %v78, %v530
    %v545 = vsub.f32 %v79, %v535
    %v546 = vsub.f32 %v80, %v540
    %v547 = vmul.f32 %v543, %v543
    %v548 = vmul.f32 %v544, %v544
    %v549 = vmul.f32 %v545, %v545
    %v550 = vmul.f32 %v546, %v546
    %551 = vmatprep.subr.mxu0 0.0
    %552 = vmatpush1.msra.mxu0 %v547
    %553 = vmatprep.subr.mxu0 0.0
    %554 = vmatpush1.msra.mxu0 %v548
    %555 = vmatprep.subr.mxu0 0.0
    %556 = vmatpush1.msra.mxu0 %v549
    %557 = vmatprep.subr.mxu0 0.0
    %558 = vmatpush1.msra.mxu0 %v550
    %559 = vmatprep.subr.mxu0 0.0
    %560 = vmatpush1.msra.mxu0 0.0
    %561 = vmatprep.subr.mxu0 0.0
    %562 = vmatpush1.msra.mxu0 0.0
    %563 = vmatprep.subr.mxu0 0.0
    %564 = vmatpush1.msra.mxu0 0.0
    %565 = vmatprep.subr.mxu0 0.0
    %566 = vmatpush1.msra.mxu0 0.0
    %567 = vmatprep.subr.mxu0 0.0
    %568 = vmatpush1.msra.mxu0 0.0
    %569 = vmatprep.subr.mxu0 0.0
    %570 = vmatpush1.msra.mxu0 0.0
    %571 = vmatprep.subr.mxu0 0.0
    %572 = vmatpush1.msra.mxu0 0.0
    %573 = vmatprep.subr.mxu0 0.0
    %574 = vmatpush1.msra.mxu0 0.0
    %575 = vmatprep.subr.mxu0 0.0
    %576 = vmatpush1.msra.mxu0 0.0
    %577 = vmatprep.subr.mxu0 0.0
    %578 = vmatpush1.msra.mxu0 0.0
    %579 = vmatprep.subr.mxu0 0.0
    %580 = vmatpush1.msra.mxu0 0.0
    %581 = vmatprep.subr.mxu0 0.0
    %582 = vmatpush1.msra.mxu0 0.0
    %583 = vmatprep.subr.mxu0 0.0
    %584 = vmatpush1.msra.mxu0 0.0
    %585 = vmatprep.subr.mxu0 0.0
    %586 = vmatpush1.msra.mxu0 0.0
    %587 = vmatprep.subr.mxu0 0.0
    %588 = vmatpush1.msra.mxu0 0.0
    %589 = vmatprep.subr.mxu0 0.0
    %590 = vmatpush1.msra.mxu0 0.0
    %591 = vmatprep.subr.mxu0 0.0
    %592 = vmatpush1.msra.mxu0 0.0
    %593 = vmatprep.subr.mxu0 0.0
    %594 = vmatpush1.msra.mxu0 0.0
    %595 = vmatprep.subr.mxu0 0.0
    %596 = vmatpush1.msra.mxu0 0.0
    %597 = vmatprep.subr.mxu0 0.0
    %598 = vmatpush1.msra.mxu0 0.0
    %599 = vmatprep.subr.mxu0 0.0
    %600 = vmatpush1.msra.mxu0 0.0
    %601 = vmatprep.subr.mxu0 0.0
    %602 = vmatpush1.msra.mxu0 0.0
    %603 = vmatprep.subr.mxu0 0.0
    %604 = vmatpush1.msra.mxu0 0.0
    %605 = vmatprep.subr.mxu0 0.0
    %606 = vmatpush1.msra.mxu0 0.0
    %607 = vmatprep.subr.mxu0 0.0
    %608 = vmatpush1.msra.mxu0 0.0
    %609 = vmatprep.subr.mxu0 0.0
    %610 = vmatpush1.msra.mxu0 0.0
    %611 = vmatprep.subr.mxu0 0.0
    %612 = vmatpush1.msra.mxu0 0.0
    %613 = vmatprep.subr.mxu0 0.0
    %614 = vmatpush1.msra.mxu0 0.0
    %615 = vmatprep.mubr.f32.mxu0 0.0
    %616 = vmatmul.mubr.f32.gmra.mrb[0].mxu0 %v209
    %v617 = vpop.f32.mrb[0].mxu0
    %v618 = vadd.f32 0.0, %v617
    %v619 = vpop.f32.mrb[0].mxu0
    %620 = vdwg.mxu0
    %v622 = vsel %vm109, %v618, 0
    %624 = vmatprep.subr.mxu0 0.0
    %625 = vmatpush1.msra.mxu0 %v281
    %626 = vmatprep.subr.mxu0 0.0
    %627 = vmatpush1.msra.mxu0 %v282
    %628 = vmatprep.subr.mxu0 0.0
    %629 = vmatpush1.msra.mxu0 %v283
    %630 = vmatprep.subr.mxu0 0.0
    %631 = vmatpush1.msra.mxu0 %v284
    %632 = vmatprep.subr.mxu0 0.0
    %633 = vmatpush1.msra.mxu0 %v285
    %634 = vmatprep.subr.mxu0 0.0
    %635 = vmatpush1.msra.mxu0 %v286
    %636 = vmatprep.subr.mxu0 0.0
    %637 = vmatpush1.msra.mxu0 %v287
    %638 = vmatprep.subr.mxu0 0.0
    %639 = vmatpush1.msra.mxu0 %v288
    %640 = vmatprep.subr.mxu0 0.0
    %641 = vmatpush1.msra.mxu0 0.0
    %642 = vmatprep.subr.mxu0 0.0
    %643 = vmatpush1.msra.mxu0 0.0
    %644 = vmatprep.subr.mxu0 0.0
    %645 = vmatpush1.msra.mxu0 0.0
    %646 = vmatprep.subr.mxu0 0.0
    %647 = vmatpush1.msra.mxu0 0.0
    %648 = vmatprep.subr.mxu0 0.0
    %649 = vmatpush1.msra.mxu0 0.0
    %650 = vmatprep.subr.mxu0 0.0
    %651 = vmatpush1.msra.mxu0 0.0
    %652 = vmatprep.subr.mxu0 0.0
    %653 = vmatpush1.msra.mxu0 0.0
    %654 = vmatprep.subr.mxu0 0.0
    %655 = vmatpush1.msra.mxu0 0.0
    %656 = vmatprep.subr.mxu0 0.0
    %657 = vmatpush1.msra.mxu0 0.0
    %658 = vmatprep.subr.mxu0 0.0
    %659 = vmatpush1.msra.mxu0 0.0
    %660 = vmatprep.subr.mxu0 0.0
    %661 = vmatpush1.msra.mxu0 0.0
    %662 = vmatprep.subr.mxu0 0.0
    %663 = vmatpush1.msra.mxu0 0.0
    %664 = vmatprep.subr.mxu0 0.0
    %665 = vmatpush1.msra.mxu0 0.0
    %666 = vmatprep.subr.mxu0 0.0
    %667 = vmatpush1.msra.mxu0 0.0
    %668 = vmatprep.subr.mxu0 0.0
    %669 = vmatpush1.msra.mxu0 0.0
    %670 = vmatprep.subr.mxu0 0.0
    %671 = vmatpush1.msra.mxu0 0.0
    %672 = vmatprep.subr.mxu0 0.0
    %673 = vmatpush1.msra.mxu0 0.0
    %674 = vmatprep.subr.mxu0 0.0
    %675 = vmatpush1.msra.mxu0 0.0
    %676 = vmatprep.subr.mxu0 0.0
    %677 = vmatpush1.msra.mxu0 0.0
    %678 = vmatprep.subr.mxu0 0.0
    %679 = vmatpush1.msra.mxu0 0.0
    %680 = vmatprep.subr.mxu0 0.0
    %681 = vmatpush1.msra.mxu0 0.0
    %682 = vmatprep.subr.mxu0 0.0
    %683 = vmatpush1.msra.mxu0 0.0
    %684 = vmatprep.subr.mxu0 0.0
    %685 = vmatpush1.msra.mxu0 0.0
    %686 = vmatprep.subr.mxu0 0.0
    %687 = vmatpush1.msra.mxu0 0.0
    %688 = vmatprep.mubr.f32.mxu0 0.0
    %689 = vmatmul.mubr.f32.gmra.mrb[0].mxu0 %v622
    %v690 = vpop.f32.mrb[0].mxu0
    %v691 = vadd.f32 0.0, %v690
    %v692 = vpop.f32.mrb[0].mxu0
    %693 = vdwg.mxu0
    %v695 = vsel %vm363, %v691, 0
    %697 = vmatprep.subr.mxu0 0.0
    %698 = vmatpush1.msra.mxu0 %v369
    %699 = vmatprep.subr.mxu0 0.0
    %700 = vmatpush1.msra.mxu0 0.0
    %701 = vmatprep.subr.mxu0 0.0
    %702 = vmatpush1.msra.mxu0 0.0
    %703 = vmatprep.subr.mxu0 0.0
    %704 = vmatpush1.msra.mxu0 0.0
    %705 = vmatprep.subr.mxu0 0.0
    %706 = vmatpush1.msra.mxu0 0.0
    %707 = vmatprep.subr.mxu0 0.0
    %708 = vmatpush1.msra.mxu0 0.0
    %709 = vmatprep.subr.mxu0 0.0
    %710 = vmatpush1.msra.mxu0 0.0
    %711 = vmatprep.subr.mxu0 0.0
    %712 = vmatpush1.msra.mxu0 0.0
    %713 = vmatprep.subr.mxu0 0.0
    %714 = vmatpush1.msra.mxu0 0.0
    %715 = vmatprep.subr.mxu0 0.0
    %716 = vmatpush1.msra.mxu0 0.0
    %717 = vmatprep.subr.mxu0 0.0
    %718 = vmatpush1.msra.mxu0 0.0
    %719 = vmatprep.subr.mxu0 0.0
    %720 = vmatpush1.msra.mxu0 0.0
    %721 = vmatprep.subr.mxu0 0.0
    %722 = vmatpush1.msra.mxu0 0.0
    %723 = vmatprep.subr.mxu0 0.0
    %724 = vmatpush1.msra.mxu0 0.0
    %725 = vmatprep.subr.mxu0 0.0
    %726 = vmatpush1.msra.mxu0 0.0
    %727 = vmatprep.subr.mxu0 0.0
    %728 = vmatpush1.msra.mxu0 0.0
    %729 = vmatprep.subr.mxu0 0.0
    %730 = vmatpush1.msra.mxu0 0.0
    %731 = vmatprep.subr.mxu0 0.0
    %732 = vmatpush1.msra.mxu0 0.0
    %733 = vmatprep.subr.mxu0 0.0
    %734 = vmatpush1.msra.mxu0 0.0
    %735 = vmatprep.subr.mxu0 0.0
    %736 = vmatpush1.msra.mxu0 0.0
    %737 = vmatprep.subr.mxu0 0.0
    %738 = vmatpush1.msra.mxu0 0.0
    %739 = vmatprep.subr.mxu0 0.0
    %740 = vmatpush1.msra.mxu0 0.0
    %741 = vmatprep.subr.mxu0 0.0
    %742 = vmatpush1.msra.mxu0 0.0
    %743 = vmatprep.subr.mxu0 0.0
    %744 = vmatpush1.msra.mxu0 0.0
    %745 = vmatprep.subr.mxu0 0.0
    %746 = vmatpush1.msra.mxu0 0.0
    %747 = vmatprep.subr.mxu0 0.0
    %748 = vmatpush1.msra.mxu0 0.0
    %749 = vmatprep.subr.mxu0 0.0
    %750 = vmatpush1.msra.mxu0 0.0
    %751 = vmatprep.subr.mxu0 0.0
    %752 = vmatpush1.msra.mxu0 0.0
    %753 = vmatprep.subr.mxu0 0.0
    %754 = vmatpush1.msra.mxu0 0.0
    %755 = vmatprep.subr.mxu0 0.0
    %756 = vmatpush1.msra.mxu0 0.0
    %757 = vmatprep.subr.mxu0 0.0
    %758 = vmatpush1.msra.mxu0 0.0
    %759 = vmatprep.subr.mxu0 0.0
    %760 = vmatpush1.msra.mxu0 0.0
    %761 = vmatprep.mubr.f32.mxu0 0.0
    %762 = vmatmul.mubr.f32.gmra.mrb[0].mxu0 %v695
    %v763 = vpop.f32.mrb[0].mxu0
    %v764 = vadd.f32 1e-05, %v763
    %v765 = vpop.f32.mrb[0].mxu0
    %766 = vdwg.mxu0
    %v767 = vrsqrt.pop %v764
    %v768 = vld [vmem:[%s5] sm:$0x1]
    %v770 = vlaneseq
    %v771 = vshrl.u32 %v770, 7
    %v772 = vsub.s32 0, %v771
    %v773 = vrot.slane %v768, %v772
    %v775 = vmul.f32 %v767, %v773
    %v777 = vsel %vm454, %v775, 0
    %779 = vmatprep.subr.mxu0 0.0
    %780 = vmatpush1.msra.mxu0 %v777
    %781 = vmatprep.subr.mxu0 0.0
    %782 = vmatpush1.msra.mxu0 0.0
    %783 = vmatprep.subr.mxu0 0.0
    %784 = vmatpush1.msra.mxu0 0.0
    %785 = vmatprep.subr.mxu0 0.0
    %786 = vmatpush1.msra.mxu0 0.0
    %787 = vmatprep.subr.mxu0 0.0
    %788 = vmatpush1.msra.mxu0 0.0
    %789 = vmatprep.subr.mxu0 0.0
    %790 = vmatpush1.msra.mxu0 0.0
    %791 = vmatprep.subr.mxu0 0.0
    %792 = vmatpush1.msra.mxu0 0.0
    %793 = vmatprep.subr.mxu0 0.0
    %794 = vmatpush1.msra.mxu0 0.0
    %795 = vmatprep.subr.mxu0 0.0
    %796 = vmatpush1.msra.mxu0 0.0
    %797 = vmatprep.subr.mxu0 0.0
    %798 = vmatpush1.msra.mxu0 0.0
    %799 = vmatprep.subr.mxu0 0.0
    %800 = vmatpush1.msra.mxu0 0.0
    %801 = vmatprep.subr.mxu0 0.0
    %802 = vmatpush1.msra.mxu0 0.0
    %803 = vmatprep.subr.mxu0 0.0
    %804 = vmatpush1.msra.mxu0 0.0
    %805 = vmatprep.subr.mxu0 0.0
    %806 = vmatpush1.msra.mxu0 0.0
    %807 = vmatprep.subr.mxu0 0.0
    %808 = vmatpush1.msra.mxu0 0.0
    %809 = vmatprep.subr.mxu0 0.0
    %810 = vmatpush1.msra.mxu0 0.0
    %811 = vmatprep.subr.mxu0 0.0
    %812 = vmatpush1.msra.mxu0 0.0
    %813 = vmatprep.subr.mxu0 0.0
    %814 = vmatpush1.msra.mxu0 0.0
    %815 = vmatprep.subr.mxu0 0.0
    %816 = vmatpush1.msra.mxu0 0.0
    %817 = vmatprep.subr.mxu0 0.0
    %818 = vmatpush1.msra.mxu0 0.0
    %819 = vmatprep.subr.mxu0 0.0
    %820 = vmatpush1.msra.mxu0 0.0
    %821 = vmatprep.subr.mxu0 0.0
    %822 = vmatpush1.msra.mxu0 0.0
    %823 = vmatprep.subr.mxu0 0.0
    %824 = vmatpush1.msra.mxu0 0.0
    %825 = vmatprep.subr.mxu0 0.0
    %826 = vmatpush1.msra.mxu0 0.0
    %827 = vmatprep.subr.mxu0 0.0
    %828 = vmatpush1.msra.mxu0 0.0
    %829 = vmatprep.subr.mxu0 0.0
    %830 = vmatpush1.msra.mxu0 0.0
    %831 = vmatprep.subr.mxu0 0.0
    %832 = vmatpush1.msra.mxu0 0.0
    %833 = vmatprep.subr.mxu0 0.0
    %834 = vmatpush1.msra.mxu0 0.0
    %835 = vmatprep.subr.mxu0 0.0
    %836 = vmatpush1.msra.mxu0 0.0
    %837 = vmatprep.subr.mxu0 0.0
    %838 = vmatpush1.msra.mxu0 0.0
    %839 = vmatprep.subr.mxu0 0.0
    %840 = vmatpush1.msra.mxu0 0.0
    %841 = vmatprep.subr.mxu0 0.0
    %842 = vmatpush1.msra.mxu0 0.0
    %843 = vmatprep.mubr.f32.mxu0 0.0
    %844 = vmatmul.mubr.f32.gmra.mrb[0].mxu0 %v443
    %v845 = vpop.f32.mrb[0].mxu0
    %v846 = vadd.f32 0.0, %v845
    %v847 = vpop.f32.mrb[0].mxu0
    %848 = vmatprep.mubr.f32.mxu0 0.0
    %849 = vmatmul.mubr.f32.gmra.mrb[0].mxu0 %v446
    %v850 = vpop.f32.mrb[0].mxu0
    %v851 = vadd.f32 0.0, %v850
    %v852 = vpop.f32.mrb[0].mxu0
    %853 = vmatprep.mubr.f32.mxu0 0.0
    %854 = vmatmul.mubr.f32.gmra.mrb[0].mxu0 %v449
    %v855 = vpop.f32.mrb[0].mxu0
    %v856 = vadd.f32 0.0, %v855
    %v857 = vpop.f32.mrb[0].mxu0
    %858 = vmatprep.mubr.f32.mxu0 0.0
    %859 = vmatmul.mubr.f32.gmra.mrb[0].mxu0 %v452
    %v860 = vpop.f32.mrb[0].mxu0
    %v861 = vadd.f32 0.0, %v860
    %v862 = vpop.f32.mrb[0].mxu0
    %863 = vdwg.mxu0
    %v864 = vmul.f32 %v543, %v846
    %v865 = vmul.f32 %v544, %v851
    %v866 = vmul.f32 %v545, %v856
    %v867 = vmul.f32 %v546, %v861
    %v868 = vld [vmem:[%s6] sm:$0x1]
    %v870 = vlaneseq
    %v871 = vshrl.u32 %v870, 7
    %v872 = vsub.s32 0, %v871
    %v873 = vrot.slane %v868, %v872
    %v875 = vadd.f32 %v864, %v873
    %v876 = vadd.f32 %v865, %v873
    %v877 = vadd.f32 %v866, %v873
    %v878 = vadd.f32 %v867, %v873
    %v879 = vmul.f32 %v875, 0.5
    %v880 = vmul.f32 %v876, 0.5
    %v881 = vmul.f32 %v877, 0.5
    %v882 = vmul.f32 %v878, 0.5
    %v883 = vtanh.pop %v879
    %v884 = vtanh.pop %v880
    %v885 = vtanh.pop %v881
    %v886 = vtanh.pop %v882
    %v887 = vadd.f32 %v883, 1.0
    %v888 = vadd.f32 %v884, 1.0
    %v889 = vadd.f32 %v885, 1.0
    %v890 = vadd.f32 %v886, 1.0
    %v891 = vmul.f32 %v879, %v887
    %v892 = vmul.f32 %v880, %v888
    %v893 = vmul.f32 %v881, %v889
    %v894 = vmul.f32 %v882, %v890
    %vm899 = vcmask 1040384
    %v900 = vrot.slane %v891, 7
    %v901 = vrot.slane %v892, 7
    %v902 = vsel %vm899, %v900, %v901
    %v903 = vrot.slane %v893, 7
    %v904 = vsel %vm899, %v901, %v903
    %v905 = vrot.slane %v894, 7
    %v906 = vsel %vm899, %v903, %v905
    %v911 = vsel %vm899, 0.0, %v900
    %913 = vset.pattern.permute.xlu0 0
    %914 = vperm.xlu0 %913, %v86
    %v915 = vpop.permute.xlu0 %914
    %918 = vset.pattern.permute.xlu0 0
    %919 = vperm.xlu0 %918, %v87
    %v920 = vpop.permute.xlu0 %919
    %923 = vset.pattern.permute.xlu0 0
    %924 = vperm.xlu0 %923, %v88
    %v925 = vpop.permute.xlu0 %924
    %928 = vset.pattern.permute.xlu0 0
    %929 = vperm.xlu0 %928, %v89
    %v930 = vpop.permute.xlu0 %929
    %v932 = vmul.f32 %v915, %v911
    %v933 = vmul.f32 %v920, %v902
    %v934 = vmul.f32 %v925, %v904
    %v935 = vmul.f32 %v930, %v906
    %vm936 = vcmask 1046528
    %v937 = vrot.slane %v891, 1
    %v938 = vrot.slane %v892, 1
    %v939 = vsel %vm936, %v937, %v938
    %v940 = vrot.slane %v893, 1
    %v941 = vsel %vm936, %v938, %v940
    %v942 = vrot.slane %v894, 1
    %v943 = vsel %vm936, %v940, %v942
    %v948 = vsel %vm936, %v942, 0.0
    %950 = vset.pattern.permute.xlu0 0
    %951 = vperm.xlu0 %950, %v90
    %v952 = vpop.permute.xlu0 %951
    %955 = vset.pattern.permute.xlu0 0
    %956 = vperm.xlu0 %955, %v91
    %v957 = vpop.permute.xlu0 %956
    %960 = vset.pattern.permute.xlu0 0
    %961 = vperm.xlu0 %960, %v92
    %v962 = vpop.permute.xlu0 %961
    %965 = vset.pattern.permute.xlu0 0
    %966 = vperm.xlu0 %965, %v93
    %v967 = vpop.permute.xlu0 %966
    %v969 = vmul.f32 %v952, %v939
    %v970 = vmul.f32 %v957, %v941
    %v971 = vmul.f32 %v962, %v943
    %v972 = vmul.f32 %v967, %v948
    %v973 = vld [vmem:[%s9] sm:$0xff]
    %v974 = vld [vmem:[%s9 + $0x8] sm:$0xff]
    %v975 = vld [vmem:[%s9 + $0x10] sm:$0xff]
    %v976 = vld [vmem:[%s9 + $0x18] sm:$0xff]
    %v977 = vld [vmem:[%s9 + $0x20] sm:$0xff]
    %v978 = vld [vmem:[%s9 + $0x28] sm:$0xff]
    %v979 = vld [vmem:[%s9 + $0x30] sm:$0xff]
    %v980 = vld [vmem:[%s9 + $0x38] sm:$0xff]
    %s981 = scalar_lea.vmem %s9, 64
    %v982 = vld [vmem:[%s981] sm:$0xff]
    %v983 = vld [vmem:[%s981 + $0x8] sm:$0xff]
    %v984 = vld [vmem:[%s981 + $0x10] sm:$0xff]
    %v985 = vld [vmem:[%s981 + $0x18] sm:$0xff]
    %v986 = vld [vmem:[%s981 + $0x20] sm:$0xff]
    %v987 = vld [vmem:[%s981 + $0x28] sm:$0xff]
    %v988 = vld [vmem:[%s981 + $0x30] sm:$0xff]
    %v989 = vld [vmem:[%s981 + $0x38] sm:$0xff]
    %v990 = vsel %vm109, %v891, 0
    %v992 = vsel %vm109, %v892, 0
    %v994 = vsel %vm109, %v893, 0
    %v996 = vsel %vm109, %v894, 0
    %998 = vmatprep.subr.mxu0 0.0
    %999 = vmatpush1.msra.mxu0 %v982
    %1000 = vmatprep.subr.mxu0 0.0
    %1001 = vmatpush1.msra.mxu0 %v983
    %1002 = vmatprep.subr.mxu0 0.0
    %1003 = vmatpush1.msra.mxu0 %v984
    %1004 = vmatprep.subr.mxu0 0.0
    %1005 = vmatpush1.msra.mxu0 %v985
    %1006 = vmatprep.subr.mxu0 0.0
    %1007 = vmatpush1.msra.mxu0 %v986
    %1008 = vmatprep.subr.mxu0 0.0
    %1009 = vmatpush1.msra.mxu0 %v987
    %1010 = vmatprep.subr.mxu0 0.0
    %1011 = vmatpush1.msra.mxu0 %v988
    %1012 = vmatprep.subr.mxu0 0.0
    %1013 = vmatpush1.msra.mxu0 %v989
    %1014 = vmatprep.subr.mxu0 0.0
    %1015 = vmatpush1.msra.mxu0 0.0
    %1016 = vmatprep.subr.mxu0 0.0
    %1017 = vmatpush1.msra.mxu0 0.0
    %1018 = vmatprep.subr.mxu0 0.0
    %1019 = vmatpush1.msra.mxu0 0.0
    %1020 = vmatprep.subr.mxu0 0.0
    %1021 = vmatpush1.msra.mxu0 0.0
    %1022 = vmatprep.subr.mxu0 0.0
    %1023 = vmatpush1.msra.mxu0 0.0
    %1024 = vmatprep.subr.mxu0 0.0
    %1025 = vmatpush1.msra.mxu0 0.0
    %1026 = vmatprep.subr.mxu0 0.0
    %1027 = vmatpush1.msra.mxu0 0.0
    %1028 = vmatprep.subr.mxu0 0.0
    %1029 = vmatpush1.msra.mxu0 0.0
    %1030 = vmatprep.subr.mxu0 0.0
    %1031 = vmatpush1.msra.mxu0 0.0
    %1032 = vmatprep.subr.mxu0 0.0
    %1033 = vmatpush1.msra.mxu0 0.0
    %1034 = vmatprep.subr.mxu0 0.0
    %1035 = vmatpush1.msra.mxu0 0.0
    %1036 = vmatprep.subr.mxu0 0.0
    %1037 = vmatpush1.msra.mxu0 0.0
    %1038 = vmatprep.subr.mxu0 0.0
    %1039 = vmatpush1.msra.mxu0 0.0
    %1040 = vmatprep.subr.mxu0 0.0
    %1041 = vmatpush1.msra.mxu0 0.0
    %1042 = vmatprep.subr.mxu0 0.0
    %1043 = vmatpush1.msra.mxu0 0.0
    %1044 = vmatprep.subr.mxu0 0.0
    %1045 = vmatpush1.msra.mxu0 0.0
    %1046 = vmatprep.subr.mxu0 0.0
    %1047 = vmatpush1.msra.mxu0 0.0
    %1048 = vmatprep.subr.mxu0 0.0
    %1049 = vmatpush1.msra.mxu0 0.0
    %1050 = vmatprep.subr.mxu0 0.0
    %1051 = vmatpush1.msra.mxu0 0.0
    %1052 = vmatprep.subr.mxu0 0.0
    %1053 = vmatpush1.msra.mxu0 0.0
    %1054 = vmatprep.subr.mxu0 0.0
    %1055 = vmatpush1.msra.mxu0 0.0
    %1056 = vmatprep.subr.mxu0 0.0
    %1057 = vmatpush1.msra.mxu0 0.0
    %1058 = vmatprep.subr.mxu0 0.0
    %1059 = vmatpush1.msra.mxu0 0.0
    %1060 = vmatprep.subr.mxu0 0.0
    %1061 = vmatpush1.msra.mxu0 0.0
    %1062 = vmatprep.mubr.f32.mxu0 0.0
    %1063 = vmatmul.mubr.f32.gmra.mrb[0].mxu0 %v990
    %v1064 = vpop.f32.mrb[0].mxu0
    %v1065 = vadd.f32 0.0, %v1064
    %v1066 = vpop.f32.mrb[0].mxu0
    %1067 = vmatprep.mubr.f32.mxu0 0.0
    %1068 = vmatmul.mubr.f32.gmra.mrb[0].mxu0 %v992
    %v1069 = vpop.f32.mrb[0].mxu0
    %v1070 = vadd.f32 0.0, %v1069
    %v1071 = vpop.f32.mrb[0].mxu0
    %1072 = vmatprep.mubr.f32.mxu0 0.0
    %1073 = vmatmul.mubr.f32.gmra.mrb[0].mxu0 %v994
    %v1074 = vpop.f32.mrb[0].mxu0
    %v1075 = vadd.f32 0.0, %v1074
    %v1076 = vpop.f32.mrb[0].mxu0
    %1077 = vmatprep.mubr.f32.mxu0 0.0
    %1078 = vmatmul.mubr.f32.gmra.mrb[0].mxu0 %v996
    %v1079 = vpop.f32.mrb[0].mxu0
    %v1080 = vadd.f32 0.0, %v1079
    %v1081 = vpop.f32.mrb[0].mxu0
    %1082 = vdwg.mxu0
    %v1084 = vsel %vm109, %v932, 0
    %v1087 = vsel %vm109, %v933, 0
    %v1090 = vsel %vm109, %v934, 0
    %v1093 = vsel %vm109, %v935, 0
    %1095 = vmatprep.subr.mxu0 0.0
    %1096 = vmatpush1.msra.mxu0 %v973
    %1097 = vmatprep.subr.mxu0 0.0
    %1098 = vmatpush1.msra.mxu0 %v974
    %1099 = vmatprep.subr.mxu0 0.0
    %1100 = vmatpush1.msra.mxu0 %v975
    %1101 = vmatprep.subr.mxu0 0.0
    %1102 = vmatpush1.msra.mxu0 %v976
    %1103 = vmatprep.subr.mxu0 0.0
    %1104 = vmatpush1.msra.mxu0 %v977
    %1105 = vmatprep.subr.mxu0 0.0
    %1106 = vmatpush1.msra.mxu0 %v978
    %1107 = vmatprep.subr.mxu0 0.0
    %1108 = vmatpush1.msra.mxu0 %v979
    %1109 = vmatprep.subr.mxu0 0.0
    %1110 = vmatpush1.msra.mxu0 %v980
    %1111 = vmatprep.subr.mxu0 0.0
    %1112 = vmatpush1.msra.mxu0 0.0
    %1113 = vmatprep.subr.mxu0 0.0
    %1114 = vmatpush1.msra.mxu0 0.0
    %1115 = vmatprep.subr.mxu0 0.0
    %1116 = vmatpush1.msra.mxu0 0.0
    %1117 = vmatprep.subr.mxu0 0.0
    %1118 = vmatpush1.msra.mxu0 0.0
    %1119 = vmatprep.subr.mxu0 0.0
    %1120 = vmatpush1.msra.mxu0 0.0
    %1121 = vmatprep.subr.mxu0 0.0
    %1122 = vmatpush1.msra.mxu0 0.0
    %1123 = vmatprep.subr.mxu0 0.0
    %1124 = vmatpush1.msra.mxu0 0.0
    %1125 = vmatprep.subr.mxu0 0.0
    %1126 = vmatpush1.msra.mxu0 0.0
    %1127 = vmatprep.subr.mxu0 0.0
    %1128 = vmatpush1.msra.mxu0 0.0
    %1129 = vmatprep.subr.mxu0 0.0
    %1130 = vmatpush1.msra.mxu0 0.0
    %1131 = vmatprep.subr.mxu0 0.0
    %1132 = vmatpush1.msra.mxu0 0.0
    %1133 = vmatprep.subr.mxu0 0.0
    %1134 = vmatpush1.msra.mxu0 0.0
    %1135 = vmatprep.subr.mxu0 0.0
    %1136 = vmatpush1.msra.mxu0 0.0
    %1137 = vmatprep.subr.mxu0 0.0
    %1138 = vmatpush1.msra.mxu0 0.0
    %1139 = vmatprep.subr.mxu0 0.0
    %1140 = vmatpush1.msra.mxu0 0.0
    %1141 = vmatprep.subr.mxu0 0.0
    %1142 = vmatpush1.msra.mxu0 0.0
    %1143 = vmatprep.subr.mxu0 0.0
    %1144 = vmatpush1.msra.mxu0 0.0
    %1145 = vmatprep.subr.mxu0 0.0
    %1146 = vmatpush1.msra.mxu0 0.0
    %1147 = vmatprep.subr.mxu0 0.0
    %1148 = vmatpush1.msra.mxu0 0.0
    %1149 = vmatprep.subr.mxu0 0.0
    %1150 = vmatpush1.msra.mxu0 0.0
    %1151 = vmatprep.subr.mxu0 0.0
    %1152 = vmatpush1.msra.mxu0 0.0
    %1153 = vmatprep.subr.mxu0 0.0
    %1154 = vmatpush1.msra.mxu0 0.0
    %1155 = vmatprep.subr.mxu0 0.0
    %1156 = vmatpush1.msra.mxu0 0.0
    %1157 = vmatprep.subr.mxu0 0.0
    %1158 = vmatpush1.msra.mxu0 0.0
    %1159 = vmatprep.mubr.f32.mxu0 0.0
    %1160 = vmatmul.mubr.f32.gmra.mrb[0].mxu0 %v1084
    %v1161 = vpop.f32.mrb[0].mxu0
    %v1162 = vadd.f32 %v1065, %v1161
    %v1163 = vpop.f32.mrb[0].mxu0
    %1164 = vmatprep.mubr.f32.mxu0 0.0
    %1165 = vmatmul.mubr.f32.gmra.mrb[0].mxu0 %v1087
    %v1166 = vpop.f32.mrb[0].mxu0
    %v1167 = vadd.f32 %v1070, %v1166
    %v1168 = vpop.f32.mrb[0].mxu0
    %1169 = vmatprep.mubr.f32.mxu0 0.0
    %1170 = vmatmul.mubr.f32.gmra.mrb[0].mxu0 %v1090
    %v1171 = vpop.f32.mrb[0].mxu0
    %v1172 = vadd.f32 %v1075, %v1171
    %v1173 = vpop.f32.mrb[0].mxu0
    %1174 = vmatprep.mubr.f32.mxu0 0.0
    %1175 = vmatmul.mubr.f32.gmra.mrb[0].mxu0 %v1093
    %v1176 = vpop.f32.mrb[0].mxu0
    %v1177 = vadd.f32 %v1080, %v1176
    %v1178 = vpop.f32.mrb[0].mxu0
    %1179 = vdwg.mxu0
    %s1180 = scalar_lea.vmem %s9, 128
    %v1181 = vld [vmem:[%s1180] sm:$0xff]
    %v1182 = vld [vmem:[%s1180 + $0x8] sm:$0xff]
    %v1183 = vld [vmem:[%s1180 + $0x10] sm:$0xff]
    %v1184 = vld [vmem:[%s1180 + $0x18] sm:$0xff]
    %v1185 = vld [vmem:[%s1180 + $0x20] sm:$0xff]
    %v1186 = vld [vmem:[%s1180 + $0x28] sm:$0xff]
    %v1187 = vld [vmem:[%s1180 + $0x30] sm:$0xff]
    %v1188 = vld [vmem:[%s1180 + $0x38] sm:$0xff]
    %v1190 = vsel %vm109, %v969, 0
    %v1193 = vsel %vm109, %v970, 0
    %v1196 = vsel %vm109, %v971, 0
    %v1199 = vsel %vm109, %v972, 0
    %1201 = vmatprep.subr.mxu0 0.0
    %1202 = vmatpush1.msra.mxu0 %v1181
    %1203 = vmatprep.subr.mxu0 0.0
    %1204 = vmatpush1.msra.mxu0 %v1182
    %1205 = vmatprep.subr.mxu0 0.0
    %1206 = vmatpush1.msra.mxu0 %v1183
    %1207 = vmatprep.subr.mxu0 0.0
    %1208 = vmatpush1.msra.mxu0 %v1184
    %1209 = vmatprep.subr.mxu0 0.0
    %1210 = vmatpush1.msra.mxu0 %v1185
    %1211 = vmatprep.subr.mxu0 0.0
    %1212 = vmatpush1.msra.mxu0 %v1186
    %1213 = vmatprep.subr.mxu0 0.0
    %1214 = vmatpush1.msra.mxu0 %v1187
    %1215 = vmatprep.subr.mxu0 0.0
    %1216 = vmatpush1.msra.mxu0 %v1188
    %1217 = vmatprep.subr.mxu0 0.0
    %1218 = vmatpush1.msra.mxu0 0.0
    %1219 = vmatprep.subr.mxu0 0.0
    %1220 = vmatpush1.msra.mxu0 0.0
    %1221 = vmatprep.subr.mxu0 0.0
    %1222 = vmatpush1.msra.mxu0 0.0
    %1223 = vmatprep.subr.mxu0 0.0
    %1224 = vmatpush1.msra.mxu0 0.0
    %1225 = vmatprep.subr.mxu0 0.0
    %1226 = vmatpush1.msra.mxu0 0.0
    %1227 = vmatprep.subr.mxu0 0.0
    %1228 = vmatpush1.msra.mxu0 0.0
    %1229 = vmatprep.subr.mxu0 0.0
    %1230 = vmatpush1.msra.mxu0 0.0
    %1231 = vmatprep.subr.mxu0 0.0
    %1232 = vmatpush1.msra.mxu0 0.0
    %1233 = vmatprep.subr.mxu0 0.0
    %1234 = vmatpush1.msra.mxu0 0.0
    %1235 = vmatprep.subr.mxu0 0.0
    %1236 = vmatpush1.msra.mxu0 0.0
    %1237 = vmatprep.subr.mxu0 0.0
    %1238 = vmatpush1.msra.mxu0 0.0
    %1239 = vmatprep.subr.mxu0 0.0
    %1240 = vmatpush1.msra.mxu0 0.0
    %1241 = vmatprep.subr.mxu0 0.0
    %1242 = vmatpush1.msra.mxu0 0.0
    %1243 = vmatprep.subr.mxu0 0.0
    %1244 = vmatpush1.msra.mxu0 0.0
    %1245 = vmatprep.subr.mxu0 0.0
    %1246 = vmatpush1.msra.mxu0 0.0
    %1247 = vmatprep.subr.mxu0 0.0
    %1248 = vmatpush1.msra.mxu0 0.0
    %1249 = vmatprep.subr.mxu0 0.0
    %1250 = vmatpush1.msra.mxu0 0.0
    %1251 = vmatprep.subr.mxu0 0.0
    %1252 = vmatpush1.msra.mxu0 0.0
    %1253 = vmatprep.subr.mxu0 0.0
    %1254 = vmatpush1.msra.mxu0 0.0
    %1255 = vmatprep.subr.mxu0 0.0
    %1256 = vmatpush1.msra.mxu0 0.0
    %1257 = vmatprep.subr.mxu0 0.0
    %1258 = vmatpush1.msra.mxu0 0.0
    %1259 = vmatprep.subr.mxu0 0.0
    %1260 = vmatpush1.msra.mxu0 0.0
    %1261 = vmatprep.subr.mxu0 0.0
    %1262 = vmatpush1.msra.mxu0 0.0
    %1263 = vmatprep.subr.mxu0 0.0
    %1264 = vmatpush1.msra.mxu0 0.0
    %1265 = vmatprep.mubr.f32.mxu0 0.0
    %1266 = vmatmul.mubr.f32.gmra.mrb[0].mxu0 %v1190
    %v1267 = vpop.f32.mrb[0].mxu0
    %v1268 = vadd.f32 0.0, %v1267
    %v1269 = vpop.f32.mrb[0].mxu0
    %1270 = vmatprep.mubr.f32.mxu0 0.0
    %1271 = vmatmul.mubr.f32.gmra.mrb[0].mxu0 %v1193
    %v1272 = vpop.f32.mrb[0].mxu0
    %v1273 = vadd.f32 0.0, %v1272
    %v1274 = vpop.f32.mrb[0].mxu0
    %1275 = vmatprep.mubr.f32.mxu0 0.0
    %1276 = vmatmul.mubr.f32.gmra.mrb[0].mxu0 %v1196
    %v1277 = vpop.f32.mrb[0].mxu0
    %v1278 = vadd.f32 0.0, %v1277
    %v1279 = vpop.f32.mrb[0].mxu0
    %1280 = vmatprep.mubr.f32.mxu0 0.0
    %1281 = vmatmul.mubr.f32.gmra.mrb[0].mxu0 %v1199
    %v1282 = vpop.f32.mrb[0].mxu0
    %v1283 = vadd.f32 0.0, %v1282
    %v1284 = vpop.f32.mrb[0].mxu0
    %1285 = vdwg.mxu0
    %v1286 = vadd.f32 %v1162, %v1268
    %v1287 = vadd.f32 %v1167, %v1273
    %v1288 = vadd.f32 %v1172, %v1278
    %v1289 = vadd.f32 %v1177, %v1283
    %v1290 = vld [vmem:[%s10] sm:$0x1]
    %v1292 = vlaneseq
    %v1293 = vshrl.u32 %v1292, 7
    %v1294 = vsub.s32 0, %v1293
    %v1295 = vrot.slane %v1290, %v1294
    %v1297 = vadd.f32 %v1286, %v1295
    %v1298 = vadd.f32 %v1287, %v1295
    %v1299 = vadd.f32 %v1288, %v1295
    %v1300 = vadd.f32 %v1289, %v1295
    %1301 = vmatprep.subr.mxu0 0.0
    %1302 = vmatpush1.msra.mxu0 %v1297
    %1303 = vmatprep.subr.mxu0 0.0
    %1304 = vmatpush1.msra.mxu0 %v1298
    %1305 = vmatprep.subr.mxu0 0.0
    %1306 = vmatpush1.msra.mxu0 %v1299
    %1307 = vmatprep.subr.mxu0 0.0
    %1308 = vmatpush1.msra.mxu0 %v1300
    %1309 = vmatprep.subr.mxu0 0.0
    %1310 = vmatpush1.msra.mxu0 0.0
    %1311 = vmatprep.subr.mxu0 0.0
    %1312 = vmatpush1.msra.mxu0 0.0
    %1313 = vmatprep.subr.mxu0 0.0
    %1314 = vmatpush1.msra.mxu0 0.0
    %1315 = vmatprep.subr.mxu0 0.0
    %1316 = vmatpush1.msra.mxu0 0.0
    %1317 = vmatprep.subr.mxu0 0.0
    %1318 = vmatpush1.msra.mxu0 0.0
    %1319 = vmatprep.subr.mxu0 0.0
    %1320 = vmatpush1.msra.mxu0 0.0
    %1321 = vmatprep.subr.mxu0 0.0
    %1322 = vmatpush1.msra.mxu0 0.0
    %1323 = vmatprep.subr.mxu0 0.0
    %1324 = vmatpush1.msra.mxu0 0.0
    %1325 = vmatprep.subr.mxu0 0.0
    %1326 = vmatpush1.msra.mxu0 0.0
    %1327 = vmatprep.subr.mxu0 0.0
    %1328 = vmatpush1.msra.mxu0 0.0
    %1329 = vmatprep.subr.mxu0 0.0
    %1330 = vmatpush1.msra.mxu0 0.0
    %1331 = vmatprep.subr.mxu0 0.0
    %1332 = vmatpush1.msra.mxu0 0.0
    %1333 = vmatprep.subr.mxu0 0.0
    %1334 = vmatpush1.msra.mxu0 0.0
    %1335 = vmatprep.subr.mxu0 0.0
    %1336 = vmatpush1.msra.mxu0 0.0
    %1337 = vmatprep.subr.mxu0 0.0
    %1338 = vmatpush1.msra.mxu0 0.0
    %1339 = vmatprep.subr.mxu0 0.0
    %1340 = vmatpush1.msra.mxu0 0.0
    %1341 = vmatprep.subr.mxu0 0.0
    %1342 = vmatpush1.msra.mxu0 0.0
    %1343 = vmatprep.subr.mxu0 0.0
    %1344 = vmatpush1.msra.mxu0 0.0
    %1345 = vmatprep.subr.mxu0 0.0
    %1346 = vmatpush1.msra.mxu0 0.0
    %1347 = vmatprep.subr.mxu0 0.0
    %1348 = vmatpush1.msra.mxu0 0.0
    %1349 = vmatprep.subr.mxu0 0.0
    %1350 = vmatpush1.msra.mxu0 0.0
    %1351 = vmatprep.subr.mxu0 0.0
    %1352 = vmatpush1.msra.mxu0 0.0
    %1353 = vmatprep.subr.mxu0 0.0
    %1354 = vmatpush1.msra.mxu0 0.0
    %1355 = vmatprep.subr.mxu0 0.0
    %1356 = vmatpush1.msra.mxu0 0.0
    %1357 = vmatprep.subr.mxu0 0.0
    %1358 = vmatpush1.msra.mxu0 0.0
    %1359 = vmatprep.subr.mxu0 0.0
    %1360 = vmatpush1.msra.mxu0 0.0
    %1361 = vmatprep.subr.mxu0 0.0
    %1362 = vmatpush1.msra.mxu0 0.0
    %1363 = vmatprep.subr.mxu0 0.0
    %1364 = vmatpush1.msra.mxu0 0.0
    %1365 = vmatprep.mubr.f32.mxu0 0.0
    %1366 = vmatmul.mubr.f32.gmra.mrb[0].mxu0 %v209
    %v1367 = vpop.f32.mrb[0].mxu0
    %v1368 = vadd.f32 0.0, %v1367
    %v1369 = vpop.f32.mrb[0].mxu0
    %1370 = vdwg.mxu0
    %v1371 = vld [vmem:[%s13] sm:$0xff]
    %v1372 = vld [vmem:[%s13 + $0x8] sm:$0xff]
    %v1373 = vld [vmem:[%s13 + $0x10] sm:$0xff]
    %v1374 = vld [vmem:[%s13 + $0x18] sm:$0xff]
    %v1375 = vld [vmem:[%s13 + $0x20] sm:$0xff]
    %v1376 = vld [vmem:[%s13 + $0x28] sm:$0xff]
    %v1377 = vld [vmem:[%s13 + $0x30] sm:$0xff]
    %v1378 = vld [vmem:[%s13 + $0x38] sm:$0xff]
    %v1379 = vld [vmem:[%s13 + $0x40] sm:$0xff]
    %v1380 = vld [vmem:[%s13 + $0x48] sm:$0xff]
    %v1381 = vld [vmem:[%s13 + $0x50] sm:$0xff]
    %v1382 = vld [vmem:[%s13 + $0x58] sm:$0xff]
    %v1383 = vld [vmem:[%s13 + $0x60] sm:$0xff]
    %v1384 = vld [vmem:[%s13 + $0x68] sm:$0xff]
    %v1385 = vld [vmem:[%s13 + $0x70] sm:$0xff]
    %v1386 = vld [vmem:[%s13 + $0x78] sm:$0xff]
    %1387 = vmatprep.subr.mxu0 0.0
    %1388 = vmatpush1.msra.mxu0 %v1371
    %1389 = vmatprep.subr.mxu0 0.0
    %1390 = vmatpush1.msra.mxu0 %v1372
    %1391 = vmatprep.subr.mxu0 0.0
    %1392 = vmatpush1.msra.mxu0 %v1373
    %1393 = vmatprep.subr.mxu0 0.0
    %1394 = vmatpush1.msra.mxu0 %v1374
    %1395 = vmatprep.subr.mxu0 0.0
    %1396 = vmatpush1.msra.mxu0 %v1375
    %1397 = vmatprep.subr.mxu0 0.0
    %1398 = vmatpush1.msra.mxu0 %v1376
    %1399 = vmatprep.subr.mxu0 0.0
    %1400 = vmatpush1.msra.mxu0 %v1377
    %1401 = vmatprep.subr.mxu0 0.0
    %1402 = vmatpush1.msra.mxu0 %v1378
    %1403 = vmatprep.subr.mxu0 0.0
    %1404 = vmatpush1.msra.mxu0 %v1379
    %1405 = vmatprep.subr.mxu0 0.0
    %1406 = vmatpush1.msra.mxu0 %v1380
    %1407 = vmatprep.subr.mxu0 0.0
    %1408 = vmatpush1.msra.mxu0 %v1381
    %1409 = vmatprep.subr.mxu0 0.0
    %1410 = vmatpush1.msra.mxu0 %v1382
    %1411 = vmatprep.subr.mxu0 0.0
    %1412 = vmatpush1.msra.mxu0 %v1383
    %1413 = vmatprep.subr.mxu0 0.0
    %1414 = vmatpush1.msra.mxu0 %v1384
    %1415 = vmatprep.subr.mxu0 0.0
    %1416 = vmatpush1.msra.mxu0 %v1385
    %1417 = vmatprep.subr.mxu0 0.0
    %1418 = vmatpush1.msra.mxu0 %v1386
    %1419 = vmatprep.subr.mxu0 0.0
    %1420 = vmatpush1.msra.mxu0 0.0
    %1421 = vmatprep.subr.mxu0 0.0
    %1422 = vmatpush1.msra.mxu0 0.0
    %1423 = vmatprep.subr.mxu0 0.0
    %1424 = vmatpush1.msra.mxu0 0.0
    %1425 = vmatprep.subr.mxu0 0.0
    %1426 = vmatpush1.msra.mxu0 0.0
    %1427 = vmatprep.subr.mxu0 0.0
    %1428 = vmatpush1.msra.mxu0 0.0
    %1429 = vmatprep.subr.mxu0 0.0
    %1430 = vmatpush1.msra.mxu0 0.0
    %1431 = vmatprep.subr.mxu0 0.0
    %1432 = vmatpush1.msra.mxu0 0.0
    %1433 = vmatprep.subr.mxu0 0.0
    %1434 = vmatpush1.msra.mxu0 0.0
    %1435 = vmatprep.subr.mxu0 0.0
    %1436 = vmatpush1.msra.mxu0 0.0
    %1437 = vmatprep.subr.mxu0 0.0
    %1438 = vmatpush1.msra.mxu0 0.0
    %1439 = vmatprep.subr.mxu0 0.0
    %1440 = vmatpush1.msra.mxu0 0.0
    %1441 = vmatprep.subr.mxu0 0.0
    %1442 = vmatpush1.msra.mxu0 0.0
    %1443 = vmatprep.subr.mxu0 0.0
    %1444 = vmatpush1.msra.mxu0 0.0
    %1445 = vmatprep.subr.mxu0 0.0
    %1446 = vmatpush1.msra.mxu0 0.0
    %1447 = vmatprep.subr.mxu0 0.0
    %1448 = vmatpush1.msra.mxu0 0.0
    %1449 = vmatprep.subr.mxu0 0.0
    %1450 = vmatpush1.msra.mxu0 0.0
    %1451 = vmatprep.mubr.f32.mxu0 0.0
    %1452 = vmatmul.mubr.f32.gmra.mrb[0].mxu0 %v1368
    %v1453 = vpop.f32.mrb[0].mxu0
    %v1454 = vadd.f32 0.0, %v1453
    %v1455 = vpop.f32.mrb[0].mxu0
    %1456 = vdwg.mxu0
    %v1457 = vld [vmem:[%s14] sm:$0xff]
    %vm1458 = vcmask 64512
    %v1460 = vsel %vm1458, %v1454, 0
    %1462 = vmatprep.subr.mxu0 0.0
    %1463 = vmatpush1.msra.mxu0 %v1457
    %1464 = vmatprep.subr.mxu0 0.0
    %1465 = vmatpush1.msra.mxu0 0.0
    %1466 = vmatprep.subr.mxu0 0.0
    %1467 = vmatpush1.msra.mxu0 0.0
    %1468 = vmatprep.subr.mxu0 0.0
    %1469 = vmatpush1.msra.mxu0 0.0
    %1470 = vmatprep.subr.mxu0 0.0
    %1471 = vmatpush1.msra.mxu0 0.0
    %1472 = vmatprep.subr.mxu0 0.0
    %1473 = vmatpush1.msra.mxu0 0.0
    %1474 = vmatprep.subr.mxu0 0.0
    %1475 = vmatpush1.msra.mxu0 0.0
    %1476 = vmatprep.subr.mxu0 0.0
    %1477 = vmatpush1.msra.mxu0 0.0
    %1478 = vmatprep.subr.mxu0 0.0
    %1479 = vmatpush1.msra.mxu0 0.0
    %1480 = vmatprep.subr.mxu0 0.0
    %1481 = vmatpush1.msra.mxu0 0.0
    %1482 = vmatprep.subr.mxu0 0.0
    %1483 = vmatpush1.msra.mxu0 0.0
    %1484 = vmatprep.subr.mxu0 0.0
    %1485 = vmatpush1.msra.mxu0 0.0
    %1486 = vmatprep.subr.mxu0 0.0
    %1487 = vmatpush1.msra.mxu0 0.0
    %1488 = vmatprep.subr.mxu0 0.0
    %1489 = vmatpush1.msra.mxu0 0.0
    %1490 = vmatprep.subr.mxu0 0.0
    %1491 = vmatpush1.msra.mxu0 0.0
    %1492 = vmatprep.subr.mxu0 0.0
    %1493 = vmatpush1.msra.mxu0 0.0
    %1494 = vmatprep.subr.mxu0 0.0
    %1495 = vmatpush1.msra.mxu0 0.0
    %1496 = vmatprep.subr.mxu0 0.0
    %1497 = vmatpush1.msra.mxu0 0.0
    %1498 = vmatprep.subr.mxu0 0.0
    %1499 = vmatpush1.msra.mxu0 0.0
    %1500 = vmatprep.subr.mxu0 0.0
    %1501 = vmatpush1.msra.mxu0 0.0
    %1502 = vmatprep.subr.mxu0 0.0
    %1503 = vmatpush1.msra.mxu0 0.0
    %1504 = vmatprep.subr.mxu0 0.0
    %1505 = vmatpush1.msra.mxu0 0.0
    %1506 = vmatprep.subr.mxu0 0.0
    %1507 = vmatpush1.msra.mxu0 0.0
    %1508 = vmatprep.subr.mxu0 0.0
    %1509 = vmatpush1.msra.mxu0 0.0
    %1510 = vmatprep.subr.mxu0 0.0
    %1511 = vmatpush1.msra.mxu0 0.0
    %1512 = vmatprep.subr.mxu0 0.0
    %1513 = vmatpush1.msra.mxu0 0.0
    %1514 = vmatprep.subr.mxu0 0.0
    %1515 = vmatpush1.msra.mxu0 0.0
    %1516 = vmatprep.subr.mxu0 0.0
    %1517 = vmatpush1.msra.mxu0 0.0
    %1518 = vmatprep.subr.mxu0 0.0
    %1519 = vmatpush1.msra.mxu0 0.0
    %1520 = vmatprep.subr.mxu0 0.0
    %1521 = vmatpush1.msra.mxu0 0.0
    %1522 = vmatprep.subr.mxu0 0.0
    %1523 = vmatpush1.msra.mxu0 0.0
    %1524 = vmatprep.subr.mxu0 0.0
    %1525 = vmatpush1.msra.mxu0 0.0
    %1526 = vmatprep.mubr.f32.mxu0 0.0
    %1527 = vmatmul.mubr.f32.gmra.mrb[0].mxu0 %v1460
    %v1528 = vpop.f32.mrb[0].mxu0
    %v1529 = vadd.f32 0.0, %v1528
    %v1530 = vpop.f32.mrb[0].mxu0
    %1531 = vdwg.mxu0
    %v1533 = vsel %vm454, %v1529, 0
    %1535 = vmatprep.subr.mxu0 0.0
    %1536 = vmatpush1.msra.mxu0 %v1533
    %1537 = vmatprep.subr.mxu0 0.0
    %1538 = vmatpush1.msra.mxu0 0.0
    %1539 = vmatprep.subr.mxu0 0.0
    %1540 = vmatpush1.msra.mxu0 0.0
    %1541 = vmatprep.subr.mxu0 0.0
    %1542 = vmatpush1.msra.mxu0 0.0
    %1543 = vmatprep.subr.mxu0 0.0
    %1544 = vmatpush1.msra.mxu0 0.0
    %1545 = vmatprep.subr.mxu0 0.0
    %1546 = vmatpush1.msra.mxu0 0.0
    %1547 = vmatprep.subr.mxu0 0.0
    %1548 = vmatpush1.msra.mxu0 0.0
    %1549 = vmatprep.subr.mxu0 0.0
    %1550 = vmatpush1.msra.mxu0 0.0
    %1551 = vmatprep.subr.mxu0 0.0
    %1552 = vmatpush1.msra.mxu0 0.0
    %1553 = vmatprep.subr.mxu0 0.0
    %1554 = vmatpush1.msra.mxu0 0.0
    %1555 = vmatprep.subr.mxu0 0.0
    %1556 = vmatpush1.msra.mxu0 0.0
    %1557 = vmatprep.subr.mxu0 0.0
    %1558 = vmatpush1.msra.mxu0 0.0
    %1559 = vmatprep.subr.mxu0 0.0
    %1560 = vmatpush1.msra.mxu0 0.0
    %1561 = vmatprep.subr.mxu0 0.0
    %1562 = vmatpush1.msra.mxu0 0.0
    %1563 = vmatprep.subr.mxu0 0.0
    %1564 = vmatpush1.msra.mxu0 0.0
    %1565 = vmatprep.subr.mxu0 0.0
    %1566 = vmatpush1.msra.mxu0 0.0
    %1567 = vmatprep.subr.mxu0 0.0
    %1568 = vmatpush1.msra.mxu0 0.0
    %1569 = vmatprep.subr.mxu0 0.0
    %1570 = vmatpush1.msra.mxu0 0.0
    %1571 = vmatprep.subr.mxu0 0.0
    %1572 = vmatpush1.msra.mxu0 0.0
    %1573 = vmatprep.subr.mxu0 0.0
    %1574 = vmatpush1.msra.mxu0 0.0
    %1575 = vmatprep.subr.mxu0 0.0
    %1576 = vmatpush1.msra.mxu0 0.0
    %1577 = vmatprep.subr.mxu0 0.0
    %1578 = vmatpush1.msra.mxu0 0.0
    %1579 = vmatprep.subr.mxu0 0.0
    %1580 = vmatpush1.msra.mxu0 0.0
    %1581 = vmatprep.subr.mxu0 0.0
    %1582 = vmatpush1.msra.mxu0 0.0
    %1583 = vmatprep.subr.mxu0 0.0
    %1584 = vmatpush1.msra.mxu0 0.0
    %1585 = vmatprep.subr.mxu0 0.0
    %1586 = vmatpush1.msra.mxu0 0.0
    %1587 = vmatprep.subr.mxu0 0.0
    %1588 = vmatpush1.msra.mxu0 0.0
    %1589 = vmatprep.subr.mxu0 0.0
    %1590 = vmatpush1.msra.mxu0 0.0
    %1591 = vmatprep.subr.mxu0 0.0
    %1592 = vmatpush1.msra.mxu0 0.0
    %1593 = vmatprep.subr.mxu0 0.0
    %1594 = vmatpush1.msra.mxu0 0.0
    %1595 = vmatprep.subr.mxu0 0.0
    %1596 = vmatpush1.msra.mxu0 0.0
    %1597 = vmatprep.subr.mxu0 0.0
    %1598 = vmatpush1.msra.mxu0 0.0
    %1599 = vmatprep.mubr.f32.mxu0 0.0
    %1600 = vmatmul.mubr.f32.gmra.mrb[0].mxu0 %v443
    %v1601 = vpop.f32.mrb[0].mxu0
    %v1602 = vadd.f32 0.0, %v1601
    %v1603 = vpop.f32.mrb[0].mxu0
    %1604 = vmatprep.mubr.f32.mxu0 0.0
    %1605 = vmatmul.mubr.f32.gmra.mrb[0].mxu0 %v446
    %v1606 = vpop.f32.mrb[0].mxu0
    %v1607 = vadd.f32 0.0, %v1606
    %v1608 = vpop.f32.mrb[0].mxu0
    %1609 = vmatprep.mubr.f32.mxu0 0.0
    %1610 = vmatmul.mubr.f32.gmra.mrb[0].mxu0 %v449
    %v1611 = vpop.f32.mrb[0].mxu0
    %v1612 = vadd.f32 0.0, %v1611
    %v1613 = vpop.f32.mrb[0].mxu0
    %1614 = vmatprep.mubr.f32.mxu0 0.0
    %1615 = vmatmul.mubr.f32.gmra.mrb[0].mxu0 %v452
    %v1616 = vpop.f32.mrb[0].mxu0
    %v1617 = vadd.f32 0.0, %v1616
    %v1618 = vpop.f32.mrb[0].mxu0
    %1619 = vdwg.mxu0
    %v1620 = vsub.f32 %v1297, %v1602
    %v1621 = vsub.f32 %v1298, %v1607
    %v1622 = vsub.f32 %v1299, %v1612
    %v1623 = vsub.f32 %v1300, %v1617
    %v1624 = vmul.f32 %v1620, %v1620
    %v1625 = vmul.f32 %v1621, %v1621
    %v1626 = vmul.f32 %v1622, %v1622
    %v1627 = vmul.f32 %v1623, %v1623
    %1628 = vmatprep.subr.mxu0 0.0
    %1629 = vmatpush1.msra.mxu0 %v1624
    %1630 = vmatprep.subr.mxu0 0.0
    %1631 = vmatpush1.msra.mxu0 %v1625
    %1632 = vmatprep.subr.mxu0 0.0
    %1633 = vmatpush1.msra.mxu0 %v1626
    %1634 = vmatprep.subr.mxu0 0.0
    %1635 = vmatpush1.msra.mxu0 %v1627
    %1636 = vmatprep.subr.mxu0 0.0
    %1637 = vmatpush1.msra.mxu0 0.0
    %1638 = vmatprep.subr.mxu0 0.0
    %1639 = vmatpush1.msra.mxu0 0.0
    %1640 = vmatprep.subr.mxu0 0.0
    %1641 = vmatpush1.msra.mxu0 0.0
    %1642 = vmatprep.subr.mxu0 0.0
    %1643 = vmatpush1.msra.mxu0 0.0
    %1644 = vmatprep.subr.mxu0 0.0
    %1645 = vmatpush1.msra.mxu0 0.0
    %1646 = vmatprep.subr.mxu0 0.0
    %1647 = vmatpush1.msra.mxu0 0.0
    %1648 = vmatprep.subr.mxu0 0.0
    %1649 = vmatpush1.msra.mxu0 0.0
    %1650 = vmatprep.subr.mxu0 0.0
    %1651 = vmatpush1.msra.mxu0 0.0
    %1652 = vmatprep.subr.mxu0 0.0
    %1653 = vmatpush1.msra.mxu0 0.0
    %1654 = vmatprep.subr.mxu0 0.0
    %1655 = vmatpush1.msra.mxu0 0.0
    %1656 = vmatprep.subr.mxu0 0.0
    %1657 = vmatpush1.msra.mxu0 0.0
    %1658 = vmatprep.subr.mxu0 0.0
    %1659 = vmatpush1.msra.mxu0 0.0
    %1660 = vmatprep.subr.mxu0 0.0
    %1661 = vmatpush1.msra.mxu0 0.0
    %1662 = vmatprep.subr.mxu0 0.0
    %1663 = vmatpush1.msra.mxu0 0.0
    %1664 = vmatprep.subr.mxu0 0.0
    %1665 = vmatpush1.msra.mxu0 0.0
    %1666 = vmatprep.subr.mxu0 0.0
    %1667 = vmatpush1.msra.mxu0 0.0
    %1668 = vmatprep.subr.mxu0 0.0
    %1669 = vmatpush1.msra.mxu0 0.0
    %1670 = vmatprep.subr.mxu0 0.0
    %1671 = vmatpush1.msra.mxu0 0.0
    %1672 = vmatprep.subr.mxu0 0.0
    %1673 = vmatpush1.msra.mxu0 0.0
    %1674 = vmatprep.subr.mxu0 0.0
    %1675 = vmatpush1.msra.mxu0 0.0
    %1676 = vmatprep.subr.mxu0 0.0
    %1677 = vmatpush1.msra.mxu0 0.0
    %1678 = vmatprep.subr.mxu0 0.0
    %1679 = vmatpush1.msra.mxu0 0.0
    %1680 = vmatprep.subr.mxu0 0.0
    %1681 = vmatpush1.msra.mxu0 0.0
    %1682 = vmatprep.subr.mxu0 0.0
    %1683 = vmatpush1.msra.mxu0 0.0
    %1684 = vmatprep.subr.mxu0 0.0
    %1685 = vmatpush1.msra.mxu0 0.0
    %1686 = vmatprep.subr.mxu0 0.0
    %1687 = vmatpush1.msra.mxu0 0.0
    %1688 = vmatprep.subr.mxu0 0.0
    %1689 = vmatpush1.msra.mxu0 0.0
    %1690 = vmatprep.subr.mxu0 0.0
    %1691 = vmatpush1.msra.mxu0 0.0
    %1692 = vmatprep.mubr.f32.mxu0 0.0
    %1693 = vmatmul.mubr.f32.gmra.mrb[0].mxu0 %v209
    %v1694 = vpop.f32.mrb[0].mxu0
    %v1695 = vadd.f32 0.0, %v1694
    %v1696 = vpop.f32.mrb[0].mxu0
    %1697 = vdwg.mxu0
    %1698 = vmatprep.subr.mxu0 0.0
    %1699 = vmatpush1.msra.mxu0 %v1371
    %1700 = vmatprep.subr.mxu0 0.0
    %1701 = vmatpush1.msra.mxu0 %v1372
    %1702 = vmatprep.subr.mxu0 0.0
    %1703 = vmatpush1.msra.mxu0 %v1373
    %1704 = vmatprep.subr.mxu0 0.0
    %1705 = vmatpush1.msra.mxu0 %v1374
    %1706 = vmatprep.subr.mxu0 0.0
    %1707 = vmatpush1.msra.mxu0 %v1375
    %1708 = vmatprep.subr.mxu0 0.0
    %1709 = vmatpush1.msra.mxu0 %v1376
    %1710 = vmatprep.subr.mxu0 0.0
    %1711 = vmatpush1.msra.mxu0 %v1377
    %1712 = vmatprep.subr.mxu0 0.0
    %1713 = vmatpush1.msra.mxu0 %v1378
    %1714 = vmatprep.subr.mxu0 0.0
    %1715 = vmatpush1.msra.mxu0 %v1379
    %1716 = vmatprep.subr.mxu0 0.0
    %1717 = vmatpush1.msra.mxu0 %v1380
    %1718 = vmatprep.subr.mxu0 0.0
    %1719 = vmatpush1.msra.mxu0 %v1381
    %1720 = vmatprep.subr.mxu0 0.0
    %1721 = vmatpush1.msra.mxu0 %v1382
    %1722 = vmatprep.subr.mxu0 0.0
    %1723 = vmatpush1.msra.mxu0 %v1383
    %1724 = vmatprep.subr.mxu0 0.0
    %1725 = vmatpush1.msra.mxu0 %v1384
    %1726 = vmatprep.subr.mxu0 0.0
    %1727 = vmatpush1.msra.mxu0 %v1385
    %1728 = vmatprep.subr.mxu0 0.0
    %1729 = vmatpush1.msra.mxu0 %v1386
    %1730 = vmatprep.subr.mxu0 0.0
    %1731 = vmatpush1.msra.mxu0 0.0
    %1732 = vmatprep.subr.mxu0 0.0
    %1733 = vmatpush1.msra.mxu0 0.0
    %1734 = vmatprep.subr.mxu0 0.0
    %1735 = vmatpush1.msra.mxu0 0.0
    %1736 = vmatprep.subr.mxu0 0.0
    %1737 = vmatpush1.msra.mxu0 0.0
    %1738 = vmatprep.subr.mxu0 0.0
    %1739 = vmatpush1.msra.mxu0 0.0
    %1740 = vmatprep.subr.mxu0 0.0
    %1741 = vmatpush1.msra.mxu0 0.0
    %1742 = vmatprep.subr.mxu0 0.0
    %1743 = vmatpush1.msra.mxu0 0.0
    %1744 = vmatprep.subr.mxu0 0.0
    %1745 = vmatpush1.msra.mxu0 0.0
    %1746 = vmatprep.subr.mxu0 0.0
    %1747 = vmatpush1.msra.mxu0 0.0
    %1748 = vmatprep.subr.mxu0 0.0
    %1749 = vmatpush1.msra.mxu0 0.0
    %1750 = vmatprep.subr.mxu0 0.0
    %1751 = vmatpush1.msra.mxu0 0.0
    %1752 = vmatprep.subr.mxu0 0.0
    %1753 = vmatpush1.msra.mxu0 0.0
    %1754 = vmatprep.subr.mxu0 0.0
    %1755 = vmatpush1.msra.mxu0 0.0
    %1756 = vmatprep.subr.mxu0 0.0
    %1757 = vmatpush1.msra.mxu0 0.0
    %1758 = vmatprep.subr.mxu0 0.0
    %1759 = vmatpush1.msra.mxu0 0.0
    %1760 = vmatprep.subr.mxu0 0.0
    %1761 = vmatpush1.msra.mxu0 0.0
    %1762 = vmatprep.mubr.f32.mxu0 0.0
    %1763 = vmatmul.mubr.f32.gmra.mrb[0].mxu0 %v1695
    %v1764 = vpop.f32.mrb[0].mxu0
    %v1765 = vadd.f32 0.0, %v1764
    %v1766 = vpop.f32.mrb[0].mxu0
    %1767 = vdwg.mxu0
    %v1769 = vsel %vm1458, %v1765, 0
    %1771 = vmatprep.subr.mxu0 0.0
    %1772 = vmatpush1.msra.mxu0 %v1457
    %1773 = vmatprep.subr.mxu0 0.0
    %1774 = vmatpush1.msra.mxu0 0.0
    %1775 = vmatprep.subr.mxu0 0.0
    %1776 = vmatpush1.msra.mxu0 0.0
    %1777 = vmatprep.subr.mxu0 0.0
    %1778 = vmatpush1.msra.mxu0 0.0
    %1779 = vmatprep.subr.mxu0 0.0
    %1780 = vmatpush1.msra.mxu0 0.0
    %1781 = vmatprep.subr.mxu0 0.0
    %1782 = vmatpush1.msra.mxu0 0.0
    %1783 = vmatprep.subr.mxu0 0.0
    %1784 = vmatpush1.msra.mxu0 0.0
    %1785 = vmatprep.subr.mxu0 0.0
    %1786 = vmatpush1.msra.mxu0 0.0
    %1787 = vmatprep.subr.mxu0 0.0
    %1788 = vmatpush1.msra.mxu0 0.0
    %1789 = vmatprep.subr.mxu0 0.0
    %1790 = vmatpush1.msra.mxu0 0.0
    %1791 = vmatprep.subr.mxu0 0.0
    %1792 = vmatpush1.msra.mxu0 0.0
    %1793 = vmatprep.subr.mxu0 0.0
    %1794 = vmatpush1.msra.mxu0 0.0
    %1795 = vmatprep.subr.mxu0 0.0
    %1796 = vmatpush1.msra.mxu0 0.0
    %1797 = vmatprep.subr.mxu0 0.0
    %1798 = vmatpush1.msra.mxu0 0.0
    %1799 = vmatprep.subr.mxu0 0.0
    %1800 = vmatpush1.msra.mxu0 0.0
    %1801 = vmatprep.subr.mxu0 0.0
    %1802 = vmatpush1.msra.mxu0 0.0
    %1803 = vmatprep.subr.mxu0 0.0
    %1804 = vmatpush1.msra.mxu0 0.0
    %1805 = vmatprep.subr.mxu0 0.0
    %1806 = vmatpush1.msra.mxu0 0.0
    %1807 = vmatprep.subr.mxu0 0.0
    %1808 = vmatpush1.msra.mxu0 0.0
    %1809 = vmatprep.subr.mxu0 0.0
    %1810 = vmatpush1.msra.mxu0 0.0
    %1811 = vmatprep.subr.mxu0 0.0
    %1812 = vmatpush1.msra.mxu0 0.0
    %1813 = vmatprep.subr.mxu0 0.0
    %1814 = vmatpush1.msra.mxu0 0.0
    %1815 = vmatprep.subr.mxu0 0.0
    %1816 = vmatpush1.msra.mxu0 0.0
    %1817 = vmatprep.subr.mxu0 0.0
    %1818 = vmatpush1.msra.mxu0 0.0
    %1819 = vmatprep.subr.mxu0 0.0
    %1820 = vmatpush1.msra.mxu0 0.0
    %1821 = vmatprep.subr.mxu0 0.0
    %1822 = vmatpush1.msra.mxu0 0.0
    %1823 = vmatprep.subr.mxu0 0.0
    %1824 = vmatpush1.msra.mxu0 0.0
    %1825 = vmatprep.subr.mxu0 0.0
    %1826 = vmatpush1.msra.mxu0 0.0
    %1827 = vmatprep.subr.mxu0 0.0
    %1828 = vmatpush1.msra.mxu0 0.0
    %1829 = vmatprep.subr.mxu0 0.0
    %1830 = vmatpush1.msra.mxu0 0.0
    %1831 = vmatprep.subr.mxu0 0.0
    %1832 = vmatpush1.msra.mxu0 0.0
    %1833 = vmatprep.subr.mxu0 0.0
    %1834 = vmatpush1.msra.mxu0 0.0
    %1835 = vmatprep.mubr.f32.mxu0 0.0
    %1836 = vmatmul.mubr.f32.gmra.mrb[0].mxu0 %v1769
    %v1837 = vpop.f32.mrb[0].mxu0
    %v1838 = vadd.f32 1e-05, %v1837
    %v1839 = vpop.f32.mrb[0].mxu0
    %1840 = vdwg.mxu0
    %v1841 = vrsqrt.pop %v1838
    %v1842 = vld [vmem:[%s11] sm:$0x1]
    %v1844 = vlaneseq
    %v1845 = vshrl.u32 %v1844, 7
    %v1846 = vsub.s32 0, %v1845
    %v1847 = vrot.slane %v1842, %v1846
    %v1849 = vmul.f32 %v1841, %v1847
    %v1851 = vsel %vm454, %v1849, 0
    %1853 = vmatprep.subr.mxu0 0.0
    %1854 = vmatpush1.msra.mxu0 %v1851
    %1855 = vmatprep.subr.mxu0 0.0
    %1856 = vmatpush1.msra.mxu0 0.0
    %1857 = vmatprep.subr.mxu0 0.0
    %1858 = vmatpush1.msra.mxu0 0.0
    %1859 = vmatprep.subr.mxu0 0.0
    %1860 = vmatpush1.msra.mxu0 0.0
    %1861 = vmatprep.subr.mxu0 0.0
    %1862 = vmatpush1.msra.mxu0 0.0
    %1863 = vmatprep.subr.mxu0 0.0
    %1864 = vmatpush1.msra.mxu0 0.0
    %1865 = vmatprep.subr.mxu0 0.0
    %1866 = vmatpush1.msra.mxu0 0.0
    %1867 = vmatprep.subr.mxu0 0.0
    %1868 = vmatpush1.msra.mxu0 0.0
    %1869 = vmatprep.subr.mxu0 0.0
    %1870 = vmatpush1.msra.mxu0 0.0
    %1871 = vmatprep.subr.mxu0 0.0
    %1872 = vmatpush1.msra.mxu0 0.0
    %1873 = vmatprep.subr.mxu0 0.0
    %1874 = vmatpush1.msra.mxu0 0.0
    %1875 = vmatprep.subr.mxu0 0.0
    %1876 = vmatpush1.msra.mxu0 0.0
    %1877 = vmatprep.subr.mxu0 0.0
    %1878 = vmatpush1.msra.mxu0 0.0
    %1879 = vmatprep.subr.mxu0 0.0
    %1880 = vmatpush1.msra.mxu0 0.0
    %1881 = vmatprep.subr.mxu0 0.0
    %1882 = vmatpush1.msra.mxu0 0.0
    %1883 = vmatprep.subr.mxu0 0.0
    %1884 = vmatpush1.msra.mxu0 0.0
    %1885 = vmatprep.subr.mxu0 0.0
    %1886 = vmatpush1.msra.mxu0 0.0
    %1887 = vmatprep.subr.mxu0 0.0
    %1888 = vmatpush1.msra.mxu0 0.0
    %1889 = vmatprep.subr.mxu0 0.0
    %1890 = vmatpush1.msra.mxu0 0.0
    %1891 = vmatprep.subr.mxu0 0.0
    %1892 = vmatpush1.msra.mxu0 0.0
    %1893 = vmatprep.subr.mxu0 0.0
    %1894 = vmatpush1.msra.mxu0 0.0
    %1895 = vmatprep.subr.mxu0 0.0
    %1896 = vmatpush1.msra.mxu0 0.0
    %1897 = vmatprep.subr.mxu0 0.0
    %1898 = vmatpush1.msra.mxu0 0.0
    %1899 = vmatprep.subr.mxu0 0.0
    %1900 = vmatpush1.msra.mxu0 0.0
    %1901 = vmatprep.subr.mxu0 0.0
    %1902 = vmatpush1.msra.mxu0 0.0
    %1903 = vmatprep.subr.mxu0 0.0
    %1904 = vmatpush1.msra.mxu0 0.0
    %1905 = vmatprep.subr.mxu0 0.0
    %1906 = vmatpush1.msra.mxu0 0.0
    %1907 = vmatprep.subr.mxu0 0.0
    %1908 = vmatpush1.msra.mxu0 0.0
    %1909 = vmatprep.subr.mxu0 0.0
    %1910 = vmatpush1.msra.mxu0 0.0
    %1911 = vmatprep.subr.mxu0 0.0
    %1912 = vmatpush1.msra.mxu0 0.0
    %1913 = vmatprep.subr.mxu0 0.0
    %1914 = vmatpush1.msra.mxu0 0.0
    %1915 = vmatprep.subr.mxu0 0.0
    %1916 = vmatpush1.msra.mxu0 0.0
    %1917 = vmatprep.mubr.f32.mxu0 0.0
    %1918 = vmatmul.mubr.f32.gmra.mrb[0].mxu0 %v443
    %v1919 = vpop.f32.mrb[0].mxu0
    %v1920 = vadd.f32 0.0, %v1919
    %v1921 = vpop.f32.mrb[0].mxu0
    %1922 = vmatprep.mubr.f32.mxu0 0.0
    %1923 = vmatmul.mubr.f32.gmra.mrb[0].mxu0 %v446
    %v1924 = vpop.f32.mrb[0].mxu0
    %v1925 = vadd.f32 0.0, %v1924
    %v1926 = vpop.f32.mrb[0].mxu0
    %1927 = vmatprep.mubr.f32.mxu0 0.0
    %1928 = vmatmul.mubr.f32.gmra.mrb[0].mxu0 %v449
    %v1929 = vpop.f32.mrb[0].mxu0
    %v1930 = vadd.f32 0.0, %v1929
    %v1931 = vpop.f32.mrb[0].mxu0
    %1932 = vmatprep.mubr.f32.mxu0 0.0
    %1933 = vmatmul.mubr.f32.gmra.mrb[0].mxu0 %v452
    %v1934 = vpop.f32.mrb[0].mxu0
    %v1935 = vadd.f32 0.0, %v1934
    %v1936 = vpop.f32.mrb[0].mxu0
    %1937 = vdwg.mxu0
    %v1938 = vmul.f32 %v1620, %v1920
    %v1939 = vmul.f32 %v1621, %v1925
    %v1940 = vmul.f32 %v1622, %v1930
    %v1941 = vmul.f32 %v1623, %v1935
    %v1942 = vld [vmem:[%s12] sm:$0x1]
    %v1944 = vlaneseq
    %v1945 = vshrl.u32 %v1944, 7
    %v1946 = vsub.s32 0, %v1945
    %v1947 = vrot.slane %v1942, %v1946
    %v1949 = vadd.f32 %v1938, %v1947
    %v1950 = vadd.f32 %v1939, %v1947
    %v1951 = vadd.f32 %v1940, %v1947
    %v1952 = vadd.f32 %v1941, %v1947
    %v1953 = vmul.f32 %v1949, 0.5
    %v1954 = vmul.f32 %v1950, 0.5
    %v1955 = vmul.f32 %v1951, 0.5
    %v1956 = vmul.f32 %v1952, 0.5
    %v1957 = vtanh.pop %v1953
    %v1958 = vtanh.pop %v1954
    %v1959 = vtanh.pop %v1955
    %v1960 = vtanh.pop %v1956
    %v1961 = vadd.f32 %v1957, 1.0
    %v1962 = vadd.f32 %v1958, 1.0
    %v1963 = vadd.f32 %v1959, 1.0
    %v1964 = vadd.f32 %v1960, 1.0
    %v1965 = vmul.f32 %v1953, %v1961
    %v1966 = vmul.f32 %v1954, %v1962
    %v1967 = vmul.f32 %v1955, %v1963
    %v1968 = vmul.f32 %v1956, %v1964
    %v1973 = vrot.slane %v1965, 7
    %v1974 = vrot.slane %v1966, 7
    %v1975 = vsel %vm899, %v1973, %v1974
    %v1976 = vrot.slane %v1967, 7
    %v1977 = vsel %vm899, %v1974, %v1976
    %v1978 = vrot.slane %v1968, 7
    %v1979 = vsel %vm899, %v1976, %v1978
    %v1984 = vsel %vm899, 0.0, %v1973
    %v1985 = vmul.f32 %v915, %v1984
    %v1986 = vmul.f32 %v920, %v1975
    %v1987 = vmul.f32 %v925, %v1977
    %v1988 = vmul.f32 %v930, %v1979
    %v1989 = vrot.slane %v1965, 1
    %v1990 = vrot.slane %v1966, 1
    %v1991 = vsel %vm936, %v1989, %v1990
    %v1992 = vrot.slane %v1967, 1
    %v1993 = vsel %vm936, %v1990, %v1992
    %v1994 = vrot.slane %v1968, 1
    %v1995 = vsel %vm936, %v1992, %v1994
    %v2000 = vsel %vm936, %v1994, 0.0
    %v2001 = vmul.f32 %v952, %v1991
    %v2002 = vmul.f32 %v957, %v1993
    %v2003 = vmul.f32 %v962, %v1995
    %v2004 = vmul.f32 %v967, %v2000
    %v2005 = vld [vmem:[#allocation2] sm:$0xff]
    %v2006 = vld [vmem:[#allocation2 + $0x8] sm:$0xff]
    %v2007 = vld [vmem:[#allocation2 + $0x10] sm:$0xff]
    %v2008 = vld [vmem:[#allocation2 + $0x18] sm:$0xff]
    %v2009 = vld [vmem:[#allocation2 + $0x20] sm:$0xff]
    %v2010 = vld [vmem:[#allocation2 + $0x28] sm:$0xff]
    %v2011 = vld [vmem:[#allocation2 + $0x30] sm:$0xff]
    %v2012 = vld [vmem:[#allocation2 + $0x38] sm:$0xff]
    %v2013 = vld [vmem:[#allocation2 + $0x40] sm:$0xff]
    %v2014 = vld [vmem:[#allocation2 + $0x48] sm:$0xff]
    %v2015 = vld [vmem:[#allocation2 + $0x50] sm:$0xff]
    %v2016 = vld [vmem:[#allocation2 + $0x58] sm:$0xff]
    %v2017 = vld [vmem:[#allocation2 + $0x60] sm:$0xff]
    %v2018 = vld [vmem:[#allocation2 + $0x68] sm:$0xff]
    %v2019 = vld [vmem:[#allocation2 + $0x70] sm:$0xff]
    %v2020 = vld [vmem:[#allocation2 + $0x78] sm:$0xff]
    %s2021 = scalar_lea.vmem [#allocation2], 128
    %v2022 = vld [vmem:[%s2021] sm:$0xff]
    %v2023 = vld [vmem:[%s2021 + $0x8] sm:$0xff]
    %v2024 = vld [vmem:[%s2021 + $0x10] sm:$0xff]
    %v2025 = vld [vmem:[%s2021 + $0x18] sm:$0xff]
    %v2026 = vld [vmem:[%s2021 + $0x20] sm:$0xff]
    %v2027 = vld [vmem:[%s2021 + $0x28] sm:$0xff]
    %v2028 = vld [vmem:[%s2021 + $0x30] sm:$0xff]
    %v2029 = vld [vmem:[%s2021 + $0x38] sm:$0xff]
    %v2030 = vld [vmem:[%s2021 + $0x40] sm:$0xff]
    %v2031 = vld [vmem:[%s2021 + $0x48] sm:$0xff]
    %v2032 = vld [vmem:[%s2021 + $0x50] sm:$0xff]
    %v2033 = vld [vmem:[%s2021 + $0x58] sm:$0xff]
    %v2034 = vld [vmem:[%s2021 + $0x60] sm:$0xff]
    %v2035 = vld [vmem:[%s2021 + $0x68] sm:$0xff]
    %v2036 = vld [vmem:[%s2021 + $0x70] sm:$0xff]
    %v2037 = vld [vmem:[%s2021 + $0x78] sm:$0xff]
    %2038 = vmatprep.subr.mxu0 0.0
    %2039 = vmatpush1.msra.mxu0 %v2022
    %2040 = vmatprep.subr.mxu0 0.0
    %2041 = vmatpush1.msra.mxu0 %v2023
    %2042 = vmatprep.subr.mxu0 0.0
    %2043 = vmatpush1.msra.mxu0 %v2024
    %2044 = vmatprep.subr.mxu0 0.0
    %2045 = vmatpush1.msra.mxu0 %v2025
    %2046 = vmatprep.subr.mxu0 0.0
    %2047 = vmatpush1.msra.mxu0 %v2026
    %2048 = vmatprep.subr.mxu0 0.0
    %2049 = vmatpush1.msra.mxu0 %v2027
    %2050 = vmatprep.subr.mxu0 0.0
    %2051 = vmatpush1.msra.mxu0 %v2028
    %2052 = vmatprep.subr.mxu0 0.0
    %2053 = vmatpush1.msra.mxu0 %v2029
    %2054 = vmatprep.subr.mxu0 0.0
    %2055 = vmatpush1.msra.mxu0 %v2030
    %2056 = vmatprep.subr.mxu0 0.0
    %2057 = vmatpush1.msra.mxu0 %v2031
    %2058 = vmatprep.subr.mxu0 0.0
    %2059 = vmatpush1.msra.mxu0 %v2032
    %2060 = vmatprep.subr.mxu0 0.0
    %2061 = vmatpush1.msra.mxu0 %v2033
    %2062 = vmatprep.subr.mxu0 0.0
    %2063 = vmatpush1.msra.mxu0 %v2034
    %2064 = vmatprep.subr.mxu0 0.0
    %2065 = vmatpush1.msra.mxu0 %v2035
    %2066 = vmatprep.subr.mxu0 0.0
    %2067 = vmatpush1.msra.mxu0 %v2036
    %2068 = vmatprep.subr.mxu0 0.0
    %2069 = vmatpush1.msra.mxu0 %v2037
    %2070 = vmatprep.subr.mxu0 0.0
    %2071 = vmatpush1.msra.mxu0 0.0
    %2072 = vmatprep.subr.mxu0 0.0
    %2073 = vmatpush1.msra.mxu0 0.0
    %2074 = vmatprep.subr.mxu0 0.0
    %2075 = vmatpush1.msra.mxu0 0.0
    %2076 = vmatprep.subr.mxu0 0.0
    %2077 = vmatpush1.msra.mxu0 0.0
    %2078 = vmatprep.subr.mxu0 0.0
    %2079 = vmatpush1.msra.mxu0 0.0
    %2080 = vmatprep.subr.mxu0 0.0
    %2081 = vmatpush1.msra.mxu0 0.0
    %2082 = vmatprep.subr.mxu0 0.0
    %2083 = vmatpush1.msra.mxu0 0.0
    %2084 = vmatprep.subr.mxu0 0.0
    %2085 = vmatpush1.msra.mxu0 0.0
    %2086 = vmatprep.subr.mxu0 0.0
    %2087 = vmatpush1.msra.mxu0 0.0
    %2088 = vmatprep.subr.mxu0 0.0
    %2089 = vmatpush1.msra.mxu0 0.0
    %2090 = vmatprep.subr.mxu0 0.0
    %2091 = vmatpush1.msra.mxu0 0.0
    %2092 = vmatprep.subr.mxu0 0.0
    %2093 = vmatpush1.msra.mxu0 0.0
    %2094 = vmatprep.subr.mxu0 0.0
    %2095 = vmatpush1.msra.mxu0 0.0
    %2096 = vmatprep.subr.mxu0 0.0
    %2097 = vmatpush1.msra.mxu0 0.0
    %2098 = vmatprep.subr.mxu0 0.0
    %2099 = vmatpush1.msra.mxu0 0.0
    %2100 = vmatprep.subr.mxu0 0.0
    %2101 = vmatpush1.msra.mxu0 0.0
    %2102 = vmatprep.mubr.f32.mxu0 0.0
    %2103 = vmatmul.mubr.f32.gmra.mrb[0].mxu0 %v1965
    %v2104 = vpop.f32.mrb[0].mxu0
    %v2105 = vadd.f32 0.0, %v2104
    %v2106 = vpop.f32.mrb[0].mxu0
    %2107 = vmatprep.mubr.f32.mxu0 0.0
    %2108 = vmatmul.mubr.f32.gmra.mrb[0].mxu0 %v1966
    %v2109 = vpop.f32.mrb[0].mxu0
    %v2110 = vadd.f32 0.0, %v2109
    %v2111 = vpop.f32.mrb[0].mxu0
    %2112 = vmatprep.mubr.f32.mxu0 0.0
    %2113 = vmatmul.mubr.f32.gmra.mrb[0].mxu0 %v1967
    %v2114 = vpop.f32.mrb[0].mxu0
    %v2115 = vadd.f32 0.0, %v2114
    %v2116 = vpop.f32.mrb[0].mxu0
    %2117 = vmatprep.mubr.f32.mxu0 0.0
    %2118 = vmatmul.mubr.f32.gmra.mrb[0].mxu0 %v1968
    %v2119 = vpop.f32.mrb[0].mxu0
    %v2120 = vadd.f32 0.0, %v2119
    %v2121 = vpop.f32.mrb[0].mxu0
    %2122 = vdwg.mxu0
    %2123 = vmatprep.subr.mxu0 0.0
    %2124 = vmatpush1.msra.mxu0 %v2005
    %2125 = vmatprep.subr.mxu0 0.0
    %2126 = vmatpush1.msra.mxu0 %v2006
    %2127 = vmatprep.subr.mxu0 0.0
    %2128 = vmatpush1.msra.mxu0 %v2007
    %2129 = vmatprep.subr.mxu0 0.0
    %2130 = vmatpush1.msra.mxu0 %v2008
    %2131 = vmatprep.subr.mxu0 0.0
    %2132 = vmatpush1.msra.mxu0 %v2009
    %2133 = vmatprep.subr.mxu0 0.0
    %2134 = vmatpush1.msra.mxu0 %v2010
    %2135 = vmatprep.subr.mxu0 0.0
    %2136 = vmatpush1.msra.mxu0 %v2011
    %2137 = vmatprep.subr.mxu0 0.0
    %2138 = vmatpush1.msra.mxu0 %v2012
    %2139 = vmatprep.subr.mxu0 0.0
    %2140 = vmatpush1.msra.mxu0 %v2013
    %2141 = vmatprep.subr.mxu0 0.0
    %2142 = vmatpush1.msra.mxu0 %v2014
    %2143 = vmatprep.subr.mxu0 0.0
    %2144 = vmatpush1.msra.mxu0 %v2015
    %2145 = vmatprep.subr.mxu0 0.0
    %2146 = vmatpush1.msra.mxu0 %v2016
    %2147 = vmatprep.subr.mxu0 0.0
    %2148 = vmatpush1.msra.mxu0 %v2017
    %2149 = vmatprep.subr.mxu0 0.0
    %2150 = vmatpush1.msra.mxu0 %v2018
    %2151 = vmatprep.subr.mxu0 0.0
    %2152 = vmatpush1.msra.mxu0 %v2019
    %2153 = vmatprep.subr.mxu0 0.0
    %2154 = vmatpush1.msra.mxu0 %v2020
    %2155 = vmatprep.subr.mxu0 0.0
    %2156 = vmatpush1.msra.mxu0 0.0
    %2157 = vmatprep.subr.mxu0 0.0
    %2158 = vmatpush1.msra.mxu0 0.0
    %2159 = vmatprep.subr.mxu0 0.0
    %2160 = vmatpush1.msra.mxu0 0.0
    %2161 = vmatprep.subr.mxu0 0.0
    %2162 = vmatpush1.msra.mxu0 0.0
    %2163 = vmatprep.subr.mxu0 0.0
    %2164 = vmatpush1.msra.mxu0 0.0
    %2165 = vmatprep.subr.mxu0 0.0
    %2166 = vmatpush1.msra.mxu0 0.0
    %2167 = vmatprep.subr.mxu0 0.0
    %2168 = vmatpush1.msra.mxu0 0.0
    %2169 = vmatprep.subr.mxu0 0.0
    %2170 = vmatpush1.msra.mxu0 0.0
    %2171 = vmatprep.subr.mxu0 0.0
    %2172 = vmatpush1.msra.mxu0 0.0
    %2173 = vmatprep.subr.mxu0 0.0
    %2174 = vmatpush1.msra.mxu0 0.0
    %2175 = vmatprep.subr.mxu0 0.0
    %2176 = vmatpush1.msra.mxu0 0.0
    %2177 = vmatprep.subr.mxu0 0.0
    %2178 = vmatpush1.msra.mxu0 0.0
    %2179 = vmatprep.subr.mxu0 0.0
    %2180 = vmatpush1.msra.mxu0 0.0
    %2181 = vmatprep.subr.mxu0 0.0
    %2182 = vmatpush1.msra.mxu0 0.0
    %2183 = vmatprep.subr.mxu0 0.0
    %2184 = vmatpush1.msra.mxu0 0.0
    %2185 = vmatprep.subr.mxu0 0.0
    %2186 = vmatpush1.msra.mxu0 0.0
    %2187 = vmatprep.mubr.f32.mxu0 0.0
    %2188 = vmatmul.mubr.f32.gmra.mrb[0].mxu0 %v1985
    %v2189 = vpop.f32.mrb[0].mxu0
    %v2190 = vadd.f32 %v2105, %v2189
    %v2191 = vpop.f32.mrb[0].mxu0
    %2192 = vmatprep.mubr.f32.mxu0 0.0
    %2193 = vmatmul.mubr.f32.gmra.mrb[0].mxu0 %v1986
    %v2194 = vpop.f32.mrb[0].mxu0
    %v2195 = vadd.f32 %v2110, %v2194
    %v2196 = vpop.f32.mrb[0].mxu0
    %2197 = vmatprep.mubr.f32.mxu0 0.0
    %2198 = vmatmul.mubr.f32.gmra.mrb[0].mxu0 %v1987
    %v2199 = vpop.f32.mrb[0].mxu0
    %v2200 = vadd.f32 %v2115, %v2199
    %v2201 = vpop.f32.mrb[0].mxu0
    %2202 = vmatprep.mubr.f32.mxu0 0.0
    %2203 = vmatmul.mubr.f32.gmra.mrb[0].mxu0 %v1988
    %v2204 = vpop.f32.mrb[0].mxu0
    %v2205 = vadd.f32 %v2120, %v2204
    %v2206 = vpop.f32.mrb[0].mxu0
    %2207 = vdwg.mxu0
    %s2208 = scalar_lea.vmem [#allocation2], 256
    %v2209 = vld [vmem:[%s2208] sm:$0xff]
    %v2210 = vld [vmem:[%s2208 + $0x8] sm:$0xff]
    %v2211 = vld [vmem:[%s2208 + $0x10] sm:$0xff]
    %v2212 = vld [vmem:[%s2208 + $0x18] sm:$0xff]
    %v2213 = vld [vmem:[%s2208 + $0x20] sm:$0xff]
    %v2214 = vld [vmem:[%s2208 + $0x28] sm:$0xff]
    %v2215 = vld [vmem:[%s2208 + $0x30] sm:$0xff]
    %v2216 = vld [vmem:[%s2208 + $0x38] sm:$0xff]
    %v2217 = vld [vmem:[%s2208 + $0x40] sm:$0xff]
    %v2218 = vld [vmem:[%s2208 + $0x48] sm:$0xff]
    %v2219 = vld [vmem:[%s2208 + $0x50] sm:$0xff]
    %v2220 = vld [vmem:[%s2208 + $0x58] sm:$0xff]
    %v2221 = vld [vmem:[%s2208 + $0x60] sm:$0xff]
    %v2222 = vld [vmem:[%s2208 + $0x68] sm:$0xff]
    %v2223 = vld [vmem:[%s2208 + $0x70] sm:$0xff]
    %v2224 = vld [vmem:[%s2208 + $0x78] sm:$0xff]
    %2225 = vmatprep.subr.mxu0 0.0
    %2226 = vmatpush1.msra.mxu0 %v2209
    %2227 = vmatprep.subr.mxu0 0.0
    %2228 = vmatpush1.msra.mxu0 %v2210
    %2229 = vmatprep.subr.mxu0 0.0
    %2230 = vmatpush1.msra.mxu0 %v2211
    %2231 = vmatprep.subr.mxu0 0.0
    %2232 = vmatpush1.msra.mxu0 %v2212
    %2233 = vmatprep.subr.mxu0 0.0
    %2234 = vmatpush1.msra.mxu0 %v2213
    %2235 = vmatprep.subr.mxu0 0.0
    %2236 = vmatpush1.msra.mxu0 %v2214
    %2237 = vmatprep.subr.mxu0 0.0
    %2238 = vmatpush1.msra.mxu0 %v2215
    %2239 = vmatprep.subr.mxu0 0.0
    %2240 = vmatpush1.msra.mxu0 %v2216
    %2241 = vmatprep.subr.mxu0 0.0
    %2242 = vmatpush1.msra.mxu0 %v2217
    %2243 = vmatprep.subr.mxu0 0.0
    %2244 = vmatpush1.msra.mxu0 %v2218
    %2245 = vmatprep.subr.mxu0 0.0
    %2246 = vmatpush1.msra.mxu0 %v2219
    %2247 = vmatprep.subr.mxu0 0.0
    %2248 = vmatpush1.msra.mxu0 %v2220
    %2249 = vmatprep.subr.mxu0 0.0
    %2250 = vmatpush1.msra.mxu0 %v2221
    %2251 = vmatprep.subr.mxu0 0.0
    %2252 = vmatpush1.msra.mxu0 %v2222
    %2253 = vmatprep.subr.mxu0 0.0
    %2254 = vmatpush1.msra.mxu0 %v2223
    %2255 = vmatprep.subr.mxu0 0.0
    %2256 = vmatpush1.msra.mxu0 %v2224
    %2257 = vmatprep.subr.mxu0 0.0
    %2258 = vmatpush1.msra.mxu0 0.0
    %2259 = vmatprep.subr.mxu0 0.0
    %2260 = vmatpush1.msra.mxu0 0.0
    %2261 = vmatprep.subr.mxu0 0.0
    %2262 = vmatpush1.msra.mxu0 0.0
    %2263 = vmatprep.subr.mxu0 0.0
    %2264 = vmatpush1.msra.mxu0 0.0
    %2265 = vmatprep.subr.mxu0 0.0
    %2266 = vmatpush1.msra.mxu0 0.0
    %2267 = vmatprep.subr.mxu0 0.0
    %2268 = vmatpush1.msra.mxu0 0.0
    %2269 = vmatprep.subr.mxu0 0.0
    %2270 = vmatpush1.msra.mxu0 0.0
    %2271 = vmatprep.subr.mxu0 0.0
    %2272 = vmatpush1.msra.mxu0 0.0
    %2273 = vmatprep.subr.mxu0 0.0
    %2274 = vmatpush1.msra.mxu0 0.0
    %2275 = vmatprep.subr.mxu0 0.0
    %2276 = vmatpush1.msra.mxu0 0.0
    %2277 = vmatprep.subr.mxu0 0.0
    %2278 = vmatpush1.msra.mxu0 0.0
    %2279 = vmatprep.subr.mxu0 0.0
    %2280 = vmatpush1.msra.mxu0 0.0
    %2281 = vmatprep.subr.mxu0 0.0
    %2282 = vmatpush1.msra.mxu0 0.0
    %2283 = vmatprep.subr.mxu0 0.0
    %2284 = vmatpush1.msra.mxu0 0.0
    %2285 = vmatprep.subr.mxu0 0.0
    %2286 = vmatpush1.msra.mxu0 0.0
    %2287 = vmatprep.subr.mxu0 0.0
    %2288 = vmatpush1.msra.mxu0 0.0
    %2289 = vmatprep.mubr.f32.mxu0 0.0
    %2290 = vmatmul.mubr.f32.gmra.mrb[0].mxu0 %v2001
    %v2291 = vpop.f32.mrb[0].mxu0
    %v2292 = vadd.f32 0.0, %v2291
    %v2293 = vpop.f32.mrb[0].mxu0
    %2294 = vmatprep.mubr.f32.mxu0 0.0
    %2295 = vmatmul.mubr.f32.gmra.mrb[0].mxu0 %v2002
    %v2296 = vpop.f32.mrb[0].mxu0
    %v2297 = vadd.f32 0.0, %v2296
    %v2298 = vpop.f32.mrb[0].mxu0
    %2299 = vmatprep.mubr.f32.mxu0 0.0
    %2300 = vmatmul.mubr.f32.gmra.mrb[0].mxu0 %v2003
    %v2301 = vpop.f32.mrb[0].mxu0
    %v2302 = vadd.f32 0.0, %v2301
    %v2303 = vpop.f32.mrb[0].mxu0
    %2304 = vmatprep.mubr.f32.mxu0 0.0
    %2305 = vmatmul.mubr.f32.gmra.mrb[0].mxu0 %v2004
    %v2306 = vpop.f32.mrb[0].mxu0
    %v2307 = vadd.f32 0.0, %v2306
    %v2308 = vpop.f32.mrb[0].mxu0
    %2309 = vdwg.mxu0
    %v2310 = vadd.f32 %v2190, %v2292
    %v2311 = vadd.f32 %v2195, %v2297
    %v2312 = vadd.f32 %v2200, %v2302
    %v2313 = vadd.f32 %v2205, %v2307
    %v2314 = vld [vmem:[%s16] sm:$0x1]
    %v2316 = vlaneseq
    %v2317 = vshrl.u32 %v2316, 7
    %v2318 = vsub.s32 0, %v2317
    %v2319 = vrot.slane %v2314, %v2318
    %v2321 = vadd.f32 %v2310, %v2319
    %v2322 = vadd.f32 %v2311, %v2319
    %v2323 = vadd.f32 %v2312, %v2319
    %v2324 = vadd.f32 %v2313, %v2319
    %v2325 = vadd.f32 %v2321, %v189
    %v2326 = vadd.f32 %v2322, %v194
    %v2327 = vadd.f32 %v2323, %v199
    %v2328 = vadd.f32 %v2324, %v204
    %2329 = vst [vmem:[#allocation5] sm:$0xff] %v2325
    %2330 = vst [vmem:[#allocation5 + $0x8] sm:$0xff] %v2326
    %2331 = vst [vmem:[#allocation5 + $0x10] sm:$0xff] %v2327
    %2332 = vst [vmem:[#allocation5 + $0x18] sm:$0xff] %v2328
    // Predicated region
    $region82: #{tpu_custom_call.1} parent=1 // pred_check
      _
    $region83: #{tpu_custom_call.1} parent=1 // pred_check_branch
      %2334 = sbr.rel (0) target = $region85
    $region84: #{tpu_custom_call.1} parent=1 // pred_region
      %s2336 = ssub.s32 512, 512
      %2337 = vsyncadd [#allocation4], %s2336
      %s2338 = sshll.u32 [#allocation5], 4
      %s2339 = int_to_ptr.vmem [resolvable:$true] %s2338
      %2344 = dma.vmem_to_hbm [thread:$0]  %s2339, 512, %s19, [#allocation4], 128, 128, 8
    $region85: #{tpu_custom_call.1} parent=1 // pred_fallthru
      _
    // Predicated region
    $region86: #{tpu_custom_call.1} parent=1 // pred_check
      _
    $region87: #{tpu_custom_call.1} parent=1 // pred_check_branch
      %2346 = sbr.rel (0) target = $region89
    $region88: #{tpu_custom_call.1} parent=1 // pred_region
      %2347 = dma.done [#allocation4], 512
    $region89: #{tpu_custom_call.1} parent=1 // pred_fallthru
      _
    %2348 = vsyncpa [#allocation3], 1
    %2349 = vsyncpa [#allocation4], 1

</llo_original>
